<compile_context>
chip_gen: v5e
topology: v5e:2x2
jax: 0.10.0
libtpu: 0.0.40
codegen_flags: <defaults>
</compile_context>

<pallas_src>
import functools
import numpy as np

import jax
import jax.numpy as jnp
from jax.experimental import pallas as pl
from jax.experimental.pallas import tpu as pltpu


def _round_up(v, m):
    return (v + m - 1) // m * m


# ---------------------------------------------------------------------------
# Pallas kernel: full fused _Block forward for one batch tile.
# ---------------------------------------------------------------------------
def _nbeats_block_kernel(num_layers, gen_has_bias, mm_dtype, x_ref, *refs):
    # refs = [W0,b0, ..., W_{L-1},b_{L-1},        FC stack (padded, bf16 W / f32 b)
    #         Wt, bt,                             fused theta projection
    #         Wg, (bg,)                           fused block-diagonal generator
    #         out_ref]                            single lane-dense output slab
    n_params = 2 * num_layers + 3 + (1 if gen_has_bias else 0)
    p = refs[:n_params]
    (out_ref,) = refs[n_params:]

    def matmul(h, w_ref):
        # MXU matmul: bf16 (or f32) inputs, f32 accumulation.
        return jnp.dot(h.astype(mm_dtype), w_ref[...],
                       preferred_element_type=jnp.float32)

    h = x_ref[...].astype(jnp.float32)

    # FC stack with ReLU (bias add + ReLU in f32 on the VPU).
    for i in range(num_layers):
        h = jnp.maximum(matmul(h, p[2 * i]) + p[2 * i + 1][...], 0.0)

    off = 2 * num_layers
    # Fused theta projection: columns [0:bc) are theta_backcast,
    # [bc:bc+fc) are theta_forecast, rest is zero padding.
    theta = matmul(h, p[off]) + p[off + 1][...]

    # Fused block-diagonal generator: one lane-dense output, columns
    # [0:in_len) = x_hat, [in_len:in_len+out_len) = y_hat, rest zero padding.
    out = matmul(theta, p[off + 2])
    if gen_has_bias:                       # only the GENERIC architecture has biases here
        out = out + p[off + 3][...]

    out_ref[...] = out.astype(out_ref.dtype)


# ---------------------------------------------------------------------------
# Wrapper: pads / fuses parameters, builds BlockSpecs, calls pallas_call.
# ---------------------------------------------------------------------------
def nbeats_block_forward(x, params, *, tile_b=128, compute_dtype=jnp.bfloat16,
                         vmem_limit_bytes=None):
    B, in_len = x.shape
    num_layers = len(params["fc"])
    layer_width = params["fc"][0][0].shape[1]
    Wb, bb = params["backcast_linear"]
    Wf, bf = params["forecast_linear"]
    Gb, gb = params["backcast_g"]
    Gf, gf = params["forecast_g"]
    bc_dim, fc_dim = Wb.shape[1], Wf.shape[1]
    out_len = Gf.shape[1]

    mm_dtype = jnp.dtype(compute_dtype)
    f32 = jnp.float32

    # Lane-dense padded dims (multiples of 128).
    in_len_p = _round_up(in_len, 128)
    width_p = _round_up(layer_width, 128)
    theta_p = _round_up(bc_dim + fc_dim, 128)
    gen_out_p = _round_up(in_len + out_len, 128)

    # Batch tiling: pad batch to a multiple of tile_b (tile_b multiple of 8).
    tile_b = max(8, _round_up(tile_b, 8))
    B_p = _round_up(B, tile_b)
    grid = (B_p // tile_b,)

    # --- zero-padded input -------------------------------------------------
    x_p = jnp.zeros((B_p, in_len_p), x.dtype).at[:B, :in_len].set(x)

    # --- padded FC stack ---------------------------------------------------
    fc_padded = []
    in_dims = [in_len] + [layer_width] * (num_layers - 1)
    in_dims_p = [in_len_p] + [width_p] * (num_layers - 1)
    for (W, b), di, dip in zip(params["fc"], in_dims, in_dims_p):
        Wp = jnp.zeros((dip, width_p), mm_dtype).at[:di, :layer_width].set(W.astype(mm_dtype))
        bp = jnp.zeros((1, width_p), f32).at[0, :layer_width].set(b.astype(f32))
        fc_padded.append((Wp, bp))

    # --- fused theta projection (backcast || forecast) ----------------------
    Wt = jnp.zeros((width_p, theta_p), mm_dtype)
    Wt = Wt.at[:layer_width, :bc_dim].set(Wb.astype(mm_dtype))
    Wt = Wt.at[:layer_width, bc_dim:bc_dim + fc_dim].set(Wf.astype(mm_dtype))
    bt = jnp.zeros((1, theta_p), f32)
    bt = bt.at[0, :bc_dim].set(bb.astype(f32))
    bt = bt.at[0, bc_dim:bc_dim + fc_dim].set(bf.astype(f32))

    # --- fused block-diagonal generator ------------------------------------
    Wg = jnp.zeros((theta_p, gen_out_p), mm_dtype)
    Wg = Wg.at[:bc_dim, :in_len].set(Gb.astype(mm_dtype))
    Wg = Wg.at[bc_dim:bc_dim + fc_dim, in_len:in_len + out_len].set(Gf.astype(mm_dtype))

    # Trend / seasonality generators have identically-zero biases -> drop them.
    gen_has_bias = params.get("g_type", "generic") == "generic"

    # --- flat args + BlockSpecs ---------------------------------------------
    def full_spec(a):
        # Small parameter: load the whole (padded) array, same block every step.
        return pl.BlockSpec(a.shape, lambda i: (0, 0))

    flat_args = [x_p]
    in_specs = [pl.BlockSpec((tile_b, in_len_p), lambda i: (i, 0))]
    for W, b in fc_padded:
        flat_args += [W, b]
        in_specs += [full_spec(W), full_spec(b)]
    flat_args += [Wt, bt, Wg]
    in_specs += [full_spec(Wt), full_spec(bt), full_spec(Wg)]
    if gen_has_bias:
        bg = jnp.zeros((1, gen_out_p), f32)
        bg = bg.at[0, :in_len].set(gb.astype(f32))
        bg = bg.at[0, in_len:in_len + out_len].set(gf.astype(f32))
        flat_args.append(bg)
        in_specs.append(full_spec(bg))

    out_specs = pl.BlockSpec((tile_b, gen_out_p), lambda i: (i, 0))
    out_shape = jax.ShapeDtypeStruct((B_p, gen_out_p), x.dtype)

    # TODO(synk): at realistic layer widths, consider pipeline_mode=pl.Buffered(1)
    # on the constant-index weight specs to halve their VMEM footprint (v7x).
    kernel = functools.partial(_nbeats_block_kernel, num_layers, gen_has_bias, mm_dtype)
    fused = pl.pallas_call(
        kernel,
        grid=grid,
        in_specs=in_specs,
        out_specs=out_specs,
        out_shape=out_shape,
        compiler_params=pltpu.CompilerParams(
            dimension_semantics=("parallel",),
            vmem_limit_bytes=vmem_limit_bytes,
        ),
    )(*flat_args)

    # Layout plumbing only: slice the lane-dense slab back into the two outputs.
    x_hat = fused[:B, :in_len]
    y_hat = fused[:B, in_len:in_len + out_len]
    return x_hat, y_hat


# ---------------------------------------------------------------------------
# Deterministic parameter construction (mirrors the PyTorch module's __init__).
# ---------------------------------------------------------------------------
def _init_linear(key, fan_in, fan_out, dtype=jnp.float32):
    # nn.Linear-style uniform(-1/sqrt(fan_in), 1/sqrt(fan_in)); stored (in, out).
    kw, kb = jax.random.split(key)
    bound = 1.0 / np.sqrt(fan_in)
    W = jax.random.uniform(kw, (fan_in, fan_out), dtype, -bound, bound)
    b = jax.random.uniform(kb, (fan_out,), dtype, -bound, bound)
    return W, b


def _trend_basis(ec_dim, output_dim):
    # _TrendGenerator: T[:, i] = (arange(output_dim)/output_dim)**i ; fwd = theta @ T.T
    t = np.arange(output_dim, dtype=np.float64) / output_dim
    T = np.stack([t ** i for i in range(ec_dim)], axis=1)                 # (out, ec)
    return jnp.asarray(T.T, jnp.float32), jnp.zeros((output_dim,), jnp.float32)


def _seasonality_basis(output_dim):
    # _SeasonalityGenerator: S = [1, cos(2*pi*i*n), sin(2*pi*i*n)], integer n,
    # with NO normalization of the time index — this mirrors the darts source
    # verbatim (degenerate basis and all); fwd = theta @ S.T.
    half_minus_one = int(output_dim / 2 - 1)
    n = np.arange(output_dim, dtype=np.float64)
    cols = [np.ones(output_dim, np.float64)]
    cols += [np.cos(n * 2.0 * np.pi * i) for i in range(1, half_minus_one + 1)]
    cols += [np.sin(n * 2.0 * np.pi * i) for i in range(1, half_minus_one + 1)]
    S = np.stack(cols, axis=1)                                            # (out, basis)
    return jnp.asarray(S.T, jnp.float32), jnp.zeros((output_dim,), jnp.float32)


def build_block_params(key, num_layers, layer_width, expansion_coefficient_dim,
                       input_chunk_length, target_length, g_type):
    keys = jax.random.split(key, num_layers + 4)
    fc = [_init_linear(keys[0], input_chunk_length, layer_width)]
    fc += [_init_linear(keys[i], layer_width, layer_width) for i in range(1, num_layers)]

    if g_type == "seasonality":
        bc_theta_dim = 2 * int(input_chunk_length / 2 - 1) + 1
        fc_theta_dim = 2 * int(target_length / 2 - 1) + 1
    else:
        bc_theta_dim = expansion_coefficient_dim
        fc_theta_dim = expansion_coefficient_dim

    backcast_linear = _init_linear(keys[num_layers], layer_width, bc_theta_dim)
    forecast_linear = _init_linear(keys[num_layers + 1], layer_width, fc_theta_dim)

    if g_type == "generic":
        backcast_g = _init_linear(keys[num_layers + 2], expansion_coefficient_dim, input_chunk_length)
        forecast_g = _init_linear(keys[num_layers + 3], expansion_coefficient_dim, target_length)
    elif g_type == "trend":
        backcast_g = _trend_basis(expansion_coefficient_dim, input_chunk_length)
        forecast_g = _trend_basis(expansion_coefficient_dim, target_length)
    elif g_type == "seasonality":
        backcast_g = _seasonality_basis(input_chunk_length)
        forecast_g = _seasonality_basis(target_length)
    else:
        raise ValueError("g_type not supported")

    return {
        "fc": fc,
        "backcast_linear": backcast_linear,
        "forecast_linear": forecast_linear,
        "backcast_g": backcast_g,
        "forecast_g": forecast_g,
        "g_type": g_type,
    }


# Plain-JAX reference (mirrors the kernel's matmul precision for fair compare).
def _reference_forward(x, params, compute_dtype=jnp.float32):
    dt = jnp.dtype(compute_dtype)

    def mm(h, W):
        return jnp.dot(h.astype(dt), W.astype(dt), preferred_element_type=jnp.float32)

    h = x.astype(jnp.float32)
    for (W, b) in params["fc"]:
        h = jnp.maximum(mm(h, W) + b.astype(jnp.float32), 0.0)
    tb = mm(h, params["backcast_linear"][0]) + params["backcast_linear"][1]
    tf = mm(h, params["forecast_linear"][0]) + params["forecast_linear"][1]
    x_hat = mm(tb, params["backcast_g"][0]) + params["backcast_g"][1]
    y_hat = mm(tf, params["forecast_g"][0]) + params["forecast_g"][1]
    return x_hat.astype(x.dtype), y_hat.astype(x.dtype)


if __name__ == "__main__":
    # Small, module-consistent shapes (batch chosen so the grid has 2 steps).
    batch = 256
    input_chunk_length = 16
    target_length = 8
    num_layers = 4
    layer_width = 32
    expansion_coefficient_dim = 4

    key = jax.random.PRNGKey(0)
    kx, kp = jax.random.split(key)
    x = jax.random.normal(kx, (batch, input_chunk_length), jnp.float32)

    # (g_type, compute_dtype, rtol/atol)
    configs = [
        ("generic", jnp.bfloat16, 5e-3),
        ("generic", jnp.float32, 1e-5),
        ("trend", jnp.float32, 1e-5),
        ("seasonality", jnp.float32, 1e-5),
    ]
    for g_type, dt, tol in configs:
        params = build_block_params(kp, num_layers, layer_width, expansion_coefficient_dim,
                                    input_chunk_length, target_length, g_type)
        x_hat, y_hat = nbeats_block_forward(x, params, tile_b=128, compute_dtype=dt)
        jax.block_until_ready((x_hat, y_hat))

        ref_x_hat, ref_y_hat = _reference_forward(x, params, compute_dtype=dt)
        assert x_hat.shape == (batch, input_chunk_length)
        assert y_hat.shape == (batch, target_length)
        np.testing.assert_allclose(np.asarray(x_hat), np.asarray(ref_x_hat), rtol=tol, atol=tol)
        np.testing.assert_allclose(np.asarray(y_hat), np.asarray(ref_y_hat), rtol=tol, atol=tol)

    print("KERNEL_OK")
</pallas_src>

<mosaic_0001>
module attributes {stable_mosaic.version = 11 : i64} {
  func.func @_nbeats_block_kernel(%arg0: i32, %arg1: memref<128x128xf32, #tpu.memory_space<vmem>>, %arg2: memref<128x128xbf16, #tpu.memory_space<vmem>>, %arg3: memref<1x128xf32, #tpu.memory_space<vmem>>, %arg4: memref<128x128xbf16, #tpu.memory_space<vmem>>, %arg5: memref<1x128xf32, #tpu.memory_space<vmem>>, %arg6: memref<128x128xbf16, #tpu.memory_space<vmem>>, %arg7: memref<1x128xf32, #tpu.memory_space<vmem>>, %arg8: memref<128x128xbf16, #tpu.memory_space<vmem>>, %arg9: memref<1x128xf32, #tpu.memory_space<vmem>>, %arg10: memref<128x128xbf16, #tpu.memory_space<vmem>>, %arg11: memref<1x128xf32, #tpu.memory_space<vmem>>, %arg12: memref<128x128xbf16, #tpu.memory_space<vmem>>, %arg13: memref<1x128xf32, #tpu.memory_space<vmem>>, %arg14: memref<128x128xf32, #tpu.memory_space<vmem>>) attributes {dimension_semantics = [#tpu.dimension_semantics<parallel>], iteration_bounds = array<i64: 2>, scalar_prefetch = 0 : i64, scratch_operands = 0 : i64, tpu.core_type = #tpu.core_type<tc>, window_params = [{transform_indices = @transform_0, window_bounds = array<i64: 128, 128>}, {pipeline_mode = #tpu.pipeline_mode<synchronous>, transform_indices = @transform_1, window_bounds = array<i64: 128, 128>}, {pipeline_mode = #tpu.pipeline_mode<synchronous>, transform_indices = @transform_2, window_bounds = array<i64: 1, 128>}, {pipeline_mode = #tpu.pipeline_mode<synchronous>, transform_indices = @transform_3, window_bounds = array<i64: 128, 128>}, {pipeline_mode = #tpu.pipeline_mode<synchronous>, transform_indices = @transform_4, window_bounds = array<i64: 1, 128>}, {pipeline_mode = #tpu.pipeline_mode<synchronous>, transform_indices = @transform_5, window_bounds = array<i64: 128, 128>}, {pipeline_mode = #tpu.pipeline_mode<synchronous>, transform_indices = @transform_6, window_bounds = array<i64: 1, 128>}, {pipeline_mode = #tpu.pipeline_mode<synchronous>, transform_indices = @transform_7, window_bounds = array<i64: 128, 128>}, {pipeline_mode = #tpu.pipeline_mode<synchronous>, transform_indices = @transform_8, window_bounds = array<i64: 1, 128>}, {pipeline_mode = #tpu.pipeline_mode<synchronous>, transform_indices = @transform_9, window_bounds = array<i64: 128, 128>}, {pipeline_mode = #tpu.pipeline_mode<synchronous>, transform_indices = @transform_10, window_bounds = array<i64: 1, 128>}, {pipeline_mode = #tpu.pipeline_mode<synchronous>, transform_indices = @transform_11, window_bounds = array<i64: 128, 128>}, {pipeline_mode = #tpu.pipeline_mode<synchronous>, transform_indices = @transform_12, window_bounds = array<i64: 1, 128>}, {transform_indices = @transform_13, window_bounds = array<i64: 128, 128>}]} {
    %c0 = arith.constant 0 : index
    %c0_0 = arith.constant 0 : index
    %0 = vector.load %arg1[%c0, %c0_0] : memref<128x128xf32, #tpu.memory_space<vmem>>, vector<128x128xf32>
    %1 = arith.truncf %0 : vector<128x128xf32> to vector<128x128xbf16>
    %c0_1 = arith.constant 0 : index
    %c0_2 = arith.constant 0 : index
    %2 = vector.load %arg2[%c0_1, %c0_2] : memref<128x128xbf16, #tpu.memory_space<vmem>>, vector<128x128xbf16>
    %cst = arith.constant dense<0.000000e+00> : vector<128x128xf32>
    %3 = tpu.matmul %1, %2, %cst {dimension_numbers = #tpu.dot_dimension_numbers<[1], [0], [0], [1], [0, 0, 1, 1], [], []>} : vector<128x128xbf16>, vector<128x128xbf16>, vector<128x128xf32> -> vector<128x128xf32>
    %c0_3 = arith.constant 0 : index
    %c0_4 = arith.constant 0 : index
    %4 = vector.load %arg3[%c0_3, %c0_4] : memref<1x128xf32, #tpu.memory_space<vmem>>, vector<1x128xf32>
    %5 = vector.broadcast %4 : vector<1x128xf32> to vector<128x128xf32>
    %6 = arith.addf %3, %5 : vector<128x128xf32>
    %cst_5 = arith.constant 0.000000e+00 : f32
    %7 = vector.broadcast %cst_5 : f32 to vector<128x128xf32>
    %8 = arith.maximumf %6, %7 : vector<128x128xf32>
    %9 = arith.truncf %8 : vector<128x128xf32> to vector<128x128xbf16>
    %c0_6 = arith.constant 0 : index
    %c0_7 = arith.constant 0 : index
    %10 = vector.load %arg4[%c0_6, %c0_7] : memref<128x128xbf16, #tpu.memory_space<vmem>>, vector<128x128xbf16>
    %cst_8 = arith.constant dense<0.000000e+00> : vector<128x128xf32>
    %11 = tpu.matmul %9, %10, %cst_8 {dimension_numbers = #tpu.dot_dimension_numbers<[1], [0], [0], [1], [0, 0, 1, 1], [], []>} : vector<128x128xbf16>, vector<128x128xbf16>, vector<128x128xf32> -> vector<128x128xf32>
    %c0_9 = arith.constant 0 : index
    %c0_10 = arith.constant 0 : index
    %12 = vector.load %arg5[%c0_9, %c0_10] : memref<1x128xf32, #tpu.memory_space<vmem>>, vector<1x128xf32>
    %13 = vector.broadcast %12 : vector<1x128xf32> to vector<128x128xf32>
    %14 = arith.addf %11, %13 : vector<128x128xf32>
    %cst_11 = arith.constant 0.000000e+00 : f32
    %15 = vector.broadcast %cst_11 : f32 to vector<128x128xf32>
    %16 = arith.maximumf %14, %15 : vector<128x128xf32>
    %17 = arith.truncf %16 : vector<128x128xf32> to vector<128x128xbf16>
    %c0_12 = arith.constant 0 : index
    %c0_13 = arith.constant 0 : index
    %18 = vector.load %arg6[%c0_12, %c0_13] : memref<128x128xbf16, #tpu.memory_space<vmem>>, vector<128x128xbf16>
    %cst_14 = arith.constant dense<0.000000e+00> : vector<128x128xf32>
    %19 = tpu.matmul %17, %18, %cst_14 {dimension_numbers = #tpu.dot_dimension_numbers<[1], [0], [0], [1], [0, 0, 1, 1], [], []>} : vector<128x128xbf16>, vector<128x128xbf16>, vector<128x128xf32> -> vector<128x128xf32>
    %c0_15 = arith.constant 0 : index
    %c0_16 = arith.constant 0 : index
    %20 = vector.load %arg7[%c0_15, %c0_16] : memref<1x128xf32, #tpu.memory_space<vmem>>, vector<1x128xf32>
    %21 = vector.broadcast %20 : vector<1x128xf32> to vector<128x128xf32>
    %22 = arith.addf %19, %21 : vector<128x128xf32>
    %cst_17 = arith.constant 0.000000e+00 : f32
    %23 = vector.broadcast %cst_17 : f32 to vector<128x128xf32>
    %24 = arith.maximumf %22, %23 : vector<128x128xf32>
    %25 = arith.truncf %24 : vector<128x128xf32> to vector<128x128xbf16>
    %c0_18 = arith.constant 0 : index
    %c0_19 = arith.constant 0 : index
    %26 = vector.load %arg8[%c0_18, %c0_19] : memref<128x128xbf16, #tpu.memory_space<vmem>>, vector<128x128xbf16>
    %cst_20 = arith.constant dense<0.000000e+00> : vector<128x128xf32>
    %27 = tpu.matmul %25, %26, %cst_20 {dimension_numbers = #tpu.dot_dimension_numbers<[1], [0], [0], [1], [0, 0, 1, 1], [], []>} : vector<128x128xbf16>, vector<128x128xbf16>, vector<128x128xf32> -> vector<128x128xf32>
    %c0_21 = arith.constant 0 : index
    %c0_22 = arith.constant 0 : index
    %28 = vector.load %arg9[%c0_21, %c0_22] : memref<1x128xf32, #tpu.memory_space<vmem>>, vector<1x128xf32>
    %29 = vector.broadcast %28 : vector<1x128xf32> to vector<128x128xf32>
    %30 = arith.addf %27, %29 : vector<128x128xf32>
    %cst_23 = arith.constant 0.000000e+00 : f32
    %31 = vector.broadcast %cst_23 : f32 to vector<128x128xf32>
    %32 = arith.maximumf %30, %31 : vector<128x128xf32>
    %33 = arith.truncf %32 : vector<128x128xf32> to vector<128x128xbf16>
    %c0_24 = arith.constant 0 : index
    %c0_25 = arith.constant 0 : index
    %34 = vector.load %arg10[%c0_24, %c0_25] : memref<128x128xbf16, #tpu.memory_space<vmem>>, vector<128x128xbf16>
    %cst_26 = arith.constant dense<0.000000e+00> : vector<128x128xf32>
    %35 = tpu.matmul %33, %34, %cst_26 {dimension_numbers = #tpu.dot_dimension_numbers<[1], [0], [0], [1], [0, 0, 1, 1], [], []>} : vector<128x128xbf16>, vector<128x128xbf16>, vector<128x128xf32> -> vector<128x128xf32>
    %c0_27 = arith.constant 0 : index
    %c0_28 = arith.constant 0 : index
    %36 = vector.load %arg11[%c0_27, %c0_28] : memref<1x128xf32, #tpu.memory_space<vmem>>, vector<1x128xf32>
    %37 = vector.broadcast %36 : vector<1x128xf32> to vector<128x128xf32>
    %38 = arith.addf %35, %37 : vector<128x128xf32>
    %39 = arith.truncf %38 : vector<128x128xf32> to vector<128x128xbf16>
    %c0_29 = arith.constant 0 : index
    %c0_30 = arith.constant 0 : index
    %40 = vector.load %arg12[%c0_29, %c0_30] : memref<128x128xbf16, #tpu.memory_space<vmem>>, vector<128x128xbf16>
    %cst_31 = arith.constant dense<0.000000e+00> : vector<128x128xf32>
    %41 = tpu.matmul %39, %40, %cst_31 {dimension_numbers = #tpu.dot_dimension_numbers<[1], [0], [0], [1], [0, 0, 1, 1], [], []>} : vector<128x128xbf16>, vector<128x128xbf16>, vector<128x128xf32> -> vector<128x128xf32>
    %c0_32 = arith.constant 0 : index
    %c0_33 = arith.constant 0 : index
    %42 = vector.load %arg13[%c0_32, %c0_33] : memref<1x128xf32, #tpu.memory_space<vmem>>, vector<1x128xf32>
    %43 = vector.broadcast %42 : vector<1x128xf32> to vector<128x128xf32>
    %44 = arith.addf %41, %43 : vector<128x128xf32>
    %c0_34 = arith.constant 0 : index
    %c0_35 = arith.constant 0 : index
    %45 = vector.load %arg14[%c0_34, %c0_35] : memref<128x128xf32, #tpu.memory_space<vmem>>, vector<128x128xf32>
    tpu.vector_store %arg14[%c0_34, %c0_35], %44 {strides = array<i32>} : memref<128x128xf32, #tpu.memory_space<vmem>>, vector<128x128xf32>,
    return
  }
  func.func @transform_0(%arg0: i32) -> (i32, i32) {
    %c0_i32 = arith.constant 0 : i32
    %c0_i32_0 = arith.constant 0 : i32
    return %arg0, %c0_i32 : i32, i32
  }
  func.func @transform_1(%arg0: i32) -> (i32, i32) {
    %c0_i32 = arith.constant 0 : i32
    %c0_i32_0 = arith.constant 0 : i32
    %c0_i32_1 = arith.constant 0 : i32
    return %c0_i32, %c0_i32_0 : i32, i32
  }
  func.func @transform_2(%arg0: i32) -> (i32, i32) {
    %c0_i32 = arith.constant 0 : i32
    %c0_i32_0 = arith.constant 0 : i32
    %c0_i32_1 = arith.constant 0 : i32
    return %c0_i32, %c0_i32_0 : i32, i32
  }
  func.func @transform_3(%arg0: i32) -> (i32, i32) {
    %c0_i32 = arith.constant 0 : i32
    %c0_i32_0 = arith.constant 0 : i32
    %c0_i32_1 = arith.constant 0 : i32
    return %c0_i32, %c0_i32_0 : i32, i32
  }
  func.func @transform_4(%arg0: i32) -> (i32, i32) {
    %c0_i32 = arith.constant 0 : i32
    %c0_i32_0 = arith.constant 0 : i32
    %c0_i32_1 = arith.constant 0 : i32
    return %c0_i32, %c0_i32_0 : i32, i32
  }
  func.func @transform_5(%arg0: i32) -> (i32, i32) {
    %c0_i32 = arith.constant 0 : i32
    %c0_i32_0 = arith.constant 0 : i32
    %c0_i32_1 = arith.constant 0 : i32
    return %c0_i32, %c0_i32_0 : i32, i32
  }
  func.func @transform_6(%arg0: i32) -> (i32, i32) {
    %c0_i32 = arith.constant 0 : i32
    %c0_i32_0 = arith.constant 0 : i32
    %c0_i32_1 = arith.constant 0 : i32
    return %c0_i32, %c0_i32_0 : i32, i32
  }
  func.func @transform_7(%arg0: i32) -> (i32, i32) {
    %c0_i32 = arith.constant 0 : i32
    %c0_i32_0 = arith.constant 0 : i32
    %c0_i32_1 = arith.constant 0 : i32
    return %c0_i32, %c0_i32_0 : i32, i32
  }
  func.func @transform_8(%arg0: i32) -> (i32, i32) {
    %c0_i32 = arith.constant 0 : i32
    %c0_i32_0 = arith.constant 0 : i32
    %c0_i32_1 = arith.constant 0 : i32
    return %c0_i32, %c0_i32_0 : i32, i32
  }
  func.func @transform_9(%arg0: i32) -> (i32, i32) {
    %c0_i32 = arith.constant 0 : i32
    %c0_i32_0 = arith.constant 0 : i32
    %c0_i32_1 = arith.constant 0 : i32
    return %c0_i32, %c0_i32_0 : i32, i32
  }
  func.func @transform_10(%arg0: i32) -> (i32, i32) {
    %c0_i32 = arith.constant 0 : i32
    %c0_i32_0 = arith.constant 0 : i32
    %c0_i32_1 = arith.constant 0 : i32
    return %c0_i32, %c0_i32_0 : i32, i32
  }
  func.func @transform_11(%arg0: i32) -> (i32, i32) {
    %c0_i32 = arith.constant 0 : i32
    %c0_i32_0 = arith.constant 0 : i32
    %c0_i32_1 = arith.constant 0 : i32
    return %c0_i32, %c0_i32_0 : i32, i32
  }
  func.func @transform_12(%arg0: i32) -> (i32, i32) {
    %c0_i32 = arith.constant 0 : i32
    %c0_i32_0 = arith.constant 0 : i32
    %c0_i32_1 = arith.constant 0 : i32
    return %c0_i32, %c0_i32_0 : i32, i32
  }
  func.func @transform_13(%arg0: i32) -> (i32, i32) {
    %c0_i32 = arith.constant 0 : i32
    %c0_i32_0 = arith.constant 0 : i32
    return %arg0, %c0_i32 : i32, i32
  }
}

</mosaic_0001>

<llo_original>
// kernel: tpu_custom_call.1
$region0: #{tpu_custom_call.1}
  #allocation0 [shape = 'u32[]', space=smem, size = 0x4, offset = 0x4, fixed_abs, tag = 'smem constant byte address 0x4 - core index']
  #allocation1 [shape = 'u32[72,128]{1,0:T(1,128)}', space=vmem, size = 0x9000, scoped, tag = 'internal scratch']
  %s0 = inlined_call_operand.hbm [shape: f32[256,128], index: 0, kind: input, shape index: {}]
  %s1 = inlined_call_operand.hbm [shape: bf16[128,128], index: 1, kind: input, shape index: {}]
  %s2 = inlined_call_operand.vmem [shape: f32[1,128], index: 2, kind: input, shape index: {}]
  %s3 = inlined_call_operand.hbm [shape: bf16[128,128], index: 3, kind: input, shape index: {}]
  %s4 = inlined_call_operand.vmem [shape: f32[1,128], index: 4, kind: input, shape index: {}]
  %s5 = inlined_call_operand.hbm [shape: bf16[128,128], index: 5, kind: input, shape index: {}]
  %s6 = inlined_call_operand.vmem [shape: f32[1,128], index: 6, kind: input, shape index: {}]
  %s7 = inlined_call_operand.hbm [shape: bf16[128,128], index: 7, kind: input, shape index: {}]
  %s8 = inlined_call_operand.vmem [shape: f32[1,128], index: 8, kind: input, shape index: {}]
  %s9 = inlined_call_operand.hbm [shape: bf16[128,128], index: 9, kind: input, shape index: {}]
  %s10 = inlined_call_operand.vmem [shape: f32[1,128], index: 10, kind: input, shape index: {}]
  %s11 = inlined_call_operand.hbm [shape: bf16[128,128], index: 11, kind: input, shape index: {}]
  %s12 = inlined_call_operand.vmem [shape: f32[1,128], index: 12, kind: input, shape index: {}]
  %s13 = inlined_call_operand.hbm [shape: f32[256,128], index: 13, kind: output, shape index: {}]
  %s14 = sld [smem:[#allocation0]]
  $region113: #{tpu_custom_call.1} parent=0
    _
  %s16 = ssub.s32 1, %s14
  %s17 = scalar_select 0, %s16, %s14
  $region1: #{tpu_custom_call.1} parent=0
    #allocation2 [shape = 'u8[131072]{0}', space=vmem, size = 0x20000, scoped, tag = 'input window, operand 0']
    #allocation3 [shape = 's32[2]{0}', space=sflag, size = 0x8, scoped, tag = 'scoped memory for tpu_custom_call.1']
    #allocation4 [shape = 's32[2]{0}', space=sflag, size = 0x8, scoped, tag = 'scoped memory for tpu_custom_call.1']
    #allocation5 [shape = 'u8[32768]{0}', space=vmem, size = 0x8000, scoped, tag = 'input window, operand 1, single buffered']
    #allocation6 [shape = 's32[1]{0}', space=sflag, size = 0x4, scoped, tag = 'scoped memory for tpu_custom_call.1']
    #allocation7 [shape = 'u8[32768]{0}', space=vmem, size = 0x8000, scoped, tag = 'input window, operand 3, single buffered']
    #allocation8 [shape = 'u8[32768]{0}', space=vmem, size = 0x8000, scoped, tag = 'input window, operand 5, single buffered']
    #allocation9 [shape = 's32[1]{0}', space=sflag, size = 0x4, scoped, tag = 'scoped memory for tpu_custom_call.1']
    #allocation10 [shape = 'u8[32768]{0}', space=vmem, size = 0x8000, scoped, tag = 'input window, operand 7, single buffered']
    #allocation11 [shape = 'u8[32768]{0}', space=vmem, size = 0x8000, scoped, tag = 'input window, operand 9, single buffered']
    #allocation12 [shape = 's32[1]{0}', space=sflag, size = 0x4, scoped, tag = 'scoped memory for tpu_custom_call.1']
    #allocation13 [shape = 'u8[32768]{0}', space=vmem, size = 0x8000, scoped, tag = 'input window, operand 11, single buffered']
    #allocation14 [shape = 'u8[131072]{0}', space=vmem, size = 0x20000, scoped, tag = 'output window, operand 0']
    %18 = vsyncpa [#allocation3], 0
    %s19 = scalar_lea.sflag [#allocation3], 1
    %20 = vsyncpa %s19, 0
    %21 = vsyncpa [#allocation6], 0
    %22 = vsyncpa [#allocation9], 0
    %23 = vsyncpa [#allocation12], 0
    %24 = vsyncpa [#allocation4], 0
    %s25 = scalar_lea.sflag [#allocation4], 1
    %26 = vsyncpa %s25, 0
    loop: start=0, step=1, limit=4
    $region2: #{tpu_custom_call.1} parent=1 // loop_pre_header
      _
    $region3: #{tpu_custom_call.1} parent=1 // loop_header
      %s28 = sphi 0, %s32
      %p29 = scmp.ge.s32.totalorder %s28, 4
      %s38 = sphi 0, %s40
      %s41 = sphi 0, %s38
      %s42 = sphi 0, %s41
      %s58 = sphi 0, %s42
      %s62 = sphi 0, %s62
      %s64 = sphi 0, %s62
      %s65 = sphi 0, %s64
      %s79 = sphi 0, %s65
      %s83 = sphi 0, %s83
      %s85 = sphi 0, %s83
      %s86 = sphi 0, %s85
      %s100 = sphi 0, %s86
      %s104 = sphi 0, %s104
      %s106 = sphi 0, %s104
      %s107 = sphi 0, %s106
      %s121 = sphi 0, %s107
      %s125 = sphi 0, %s125
      %s127 = sphi 0, %s125
      %s128 = sphi 0, %s127
      %s142 = sphi 0, %s128
      %s146 = sphi 0, %s146
      %s148 = sphi 0, %s146
      %s149 = sphi 0, %s148
      %s163 = sphi 0, %s149
      %s167 = sphi 0, %s167
      %s169 = sphi 0, %s167
      %s170 = sphi 0, %s169
      %s184 = sphi 0, %s170
      %s188 = sphi 0, %s188
      %s190 = sphi 0, %s188
      %s191 = sphi 0, %s190
      %s205 = sphi 0, %s191
      %s209 = sphi 0, %s209
      %s211 = sphi 0, %s209
      %s212 = sphi 0, %s211
      %s226 = sphi 0, %s212
      %s230 = sphi 0, %s230
      %s232 = sphi 0, %s230
      %s233 = sphi 0, %s232
      %s247 = sphi 0, %s233
      %s251 = sphi 0, %s251
      %s253 = sphi 0, %s251
      %s254 = sphi 0, %s253
      %s268 = sphi 0, %s254
      %s272 = sphi 0, %s272
      %s274 = sphi 0, %s272
      %s275 = sphi 0, %s274
      %s289 = sphi 0, %s275
      %s293 = sphi 0, %s293
      %s295 = sphi 0, %s293
      %s296 = sphi 0, %s295
      %s310 = sphi 0, %s296
      %s316 = sphi 0, %s318
      %s319 = sphi 0, %s316
      %s320 = sphi 0, %s319
      %s336 = sphi 0, %s320
    $region4: #{tpu_custom_call.1} parent=1 // loop_header_branch
      %31 = sbr.rel (%p29) target = $region8
    $region5: #{tpu_custom_call.1} parent=1 // loop_body
      %s33 = ssub.s32 %s28, 1
      %s34 = ssub.s32 %s28, 2
      %s35 = sadd.s32 %s28, 1
      %s36 = ssub.s32 %s28, %s35
      %p37 = scmp.eq.s32.totalorder %s36, 0
      %s39 = sadd.s32 %s38, 1
      %s40 = scalar_select %p37, %s38, %s39
      %p43 = pneg %p37
      %p44 = scmp.eq.s32.totalorder %s28, 1
      %p45 = por %p43, %p44
      %p46 = scmp.ne.s32.totalorder %s38, %s41
      %p47 = scmp.eq.s32.totalorder %s28, 0
      %p48 = por %p46, %p47
      %p49 = scmp.ne.s32.totalorder %s38, %s41
      %p50 = scmp.eq.s32.totalorder %s33, 1
      %p51 = por %p49, %p50
      %p52 = scmp.ne.s32.totalorder %s41, %s42
      %p53 = scmp.eq.s32.totalorder %s33, 0
      %p54 = por %p52, %p53
      %p55 = scmp.ne.s32.totalorder %s41, %s42
      %p56 = scmp.eq.s32.totalorder %s34, 1
      %p57 = por %p55, %p56
      %p59 = scmp.ne.s32.totalorder %s42, %s58
      %p60 = scmp.eq.s32.totalorder %s34, 0
      %p61 = por %p59, %p60
      %s63 = sadd.s32 %s62, 1
      %p66 = scmp.eq.s32.totalorder %s28, 1
      %p67 = scmp.ne.s32.totalorder %s62, %s64
      %p68 = scmp.eq.s32.totalorder %s28, 0
      %p69 = por %p67, %p68
      %p70 = scmp.ne.s32.totalorder %s62, %s64
      %p71 = scmp.eq.s32.totalorder %s33, 1
      %p72 = por %p70, %p71
      %p73 = scmp.ne.s32.totalorder %s64, %s65
      %p74 = scmp.eq.s32.totalorder %s33, 0
      %p75 = por %p73, %p74
      %p76 = scmp.ne.s32.totalorder %s64, %s65
      %p77 = scmp.eq.s32.totalorder %s34, 1
      %p78 = por %p76, %p77
      %p80 = scmp.ne.s32.totalorder %s65, %s79
      %p81 = scmp.eq.s32.totalorder %s34, 0
      %p82 = por %p80, %p81
      %s84 = sadd.s32 %s83, 1
      %p87 = scmp.eq.s32.totalorder %s28, 1
      %p88 = scmp.ne.s32.totalorder %s83, %s85
      %p89 = scmp.eq.s32.totalorder %s28, 0
      %p90 = por %p88, %p89
      %p91 = scmp.ne.s32.totalorder %s83, %s85
      %p92 = scmp.eq.s32.totalorder %s33, 1
      %p93 = por %p91, %p92
      %p94 = scmp.ne.s32.totalorder %s85, %s86
      %p95 = scmp.eq.s32.totalorder %s33, 0
      %p96 = por %p94, %p95
      %p97 = scmp.ne.s32.totalorder %s85, %s86
      %p98 = scmp.eq.s32.totalorder %s34, 1
      %p99 = por %p97, %p98
      %p101 = scmp.ne.s32.totalorder %s86, %s100
      %p102 = scmp.eq.s32.totalorder %s34, 0
      %p103 = por %p101, %p102
      %s105 = sadd.s32 %s104, 1
      %p108 = scmp.eq.s32.totalorder %s28, 1
      %p109 = scmp.ne.s32.totalorder %s104, %s106
      %p110 = scmp.eq.s32.totalorder %s28, 0
      %p111 = por %p109, %p110
      %p112 = scmp.ne.s32.totalorder %s104, %s106
      %p113 = scmp.eq.s32.totalorder %s33, 1
      %p114 = por %p112, %p113
      %p115 = scmp.ne.s32.totalorder %s106, %s107
      %p116 = scmp.eq.s32.totalorder %s33, 0
      %p117 = por %p115, %p116
      %p118 = scmp.ne.s32.totalorder %s106, %s107
      %p119 = scmp.eq.s32.totalorder %s34, 1
      %p120 = por %p118, %p119
      %p122 = scmp.ne.s32.totalorder %s107, %s121
      %p123 = scmp.eq.s32.totalorder %s34, 0
      %p124 = por %p122, %p123
      %s126 = sadd.s32 %s125, 1
      %p129 = scmp.eq.s32.totalorder %s28, 1
      %p130 = scmp.ne.s32.totalorder %s125, %s127
      %p131 = scmp.eq.s32.totalorder %s28, 0
      %p132 = por %p130, %p131
      %p133 = scmp.ne.s32.totalorder %s125, %s127
      %p134 = scmp.eq.s32.totalorder %s33, 1
      %p135 = por %p133, %p134
      %p136 = scmp.ne.s32.totalorder %s127, %s128
      %p137 = scmp.eq.s32.totalorder %s33, 0
      %p138 = por %p136, %p137
      %p139 = scmp.ne.s32.totalorder %s127, %s128
      %p140 = scmp.eq.s32.totalorder %s34, 1
      %p141 = por %p139, %p140
      %p143 = scmp.ne.s32.totalorder %s128, %s142
      %p144 = scmp.eq.s32.totalorder %s34, 0
      %p145 = por %p143, %p144
      %s147 = sadd.s32 %s146, 1
      %p150 = scmp.eq.s32.totalorder %s28, 1
      %p151 = scmp.ne.s32.totalorder %s146, %s148
      %p152 = scmp.eq.s32.totalorder %s28, 0
      %p153 = por %p151, %p152
      %p154 = scmp.ne.s32.totalorder %s146, %s148
      %p155 = scmp.eq.s32.totalorder %s33, 1
      %p156 = por %p154, %p155
      %p157 = scmp.ne.s32.totalorder %s148, %s149
      %p158 = scmp.eq.s32.totalorder %s33, 0
      %p159 = por %p157, %p158
      %p160 = scmp.ne.s32.totalorder %s148, %s149
      %p161 = scmp.eq.s32.totalorder %s34, 1
      %p162 = por %p160, %p161
      %p164 = scmp.ne.s32.totalorder %s149, %s163
      %p165 = scmp.eq.s32.totalorder %s34, 0
      %p166 = por %p164, %p165
      %s168 = sadd.s32 %s167, 1
      %p171 = scmp.eq.s32.totalorder %s28, 1
      %p172 = scmp.ne.s32.totalorder %s167, %s169
      %p173 = scmp.eq.s32.totalorder %s28, 0
      %p174 = por %p172, %p173
      %p175 = scmp.ne.s32.totalorder %s167, %s169
      %p176 = scmp.eq.s32.totalorder %s33, 1
      %p177 = por %p175, %p176
      %p178 = scmp.ne.s32.totalorder %s169, %s170
      %p179 = scmp.eq.s32.totalorder %s33, 0
      %p180 = por %p178, %p179
      %p181 = scmp.ne.s32.totalorder %s169, %s170
      %p182 = scmp.eq.s32.totalorder %s34, 1
      %p183 = por %p181, %p182
      %p185 = scmp.ne.s32.totalorder %s170, %s184
      %p186 = scmp.eq.s32.totalorder %s34, 0
      %p187 = por %p185, %p186
      %s189 = sadd.s32 %s188, 1
      %p192 = scmp.eq.s32.totalorder %s28, 1
      %p193 = scmp.ne.s32.totalorder %s188, %s190
      %p194 = scmp.eq.s32.totalorder %s28, 0
      %p195 = por %p193, %p194
      %p196 = scmp.ne.s32.totalorder %s188, %s190
      %p197 = scmp.eq.s32.totalorder %s33, 1
      %p198 = por %p196, %p197
      %p199 = scmp.ne.s32.totalorder %s190, %s191
      %p200 = scmp.eq.s32.totalorder %s33, 0
      %p201 = por %p199, %p200
      %p202 = scmp.ne.s32.totalorder %s190, %s191
      %p203 = scmp.eq.s32.totalorder %s34, 1
      %p204 = por %p202, %p203
      %p206 = scmp.ne.s32.totalorder %s191, %s205
      %p207 = scmp.eq.s32.totalorder %s34, 0
      %p208 = por %p206, %p207
      %s210 = sadd.s32 %s209, 1
      %p213 = scmp.eq.s32.totalorder %s28, 1
      %p214 = scmp.ne.s32.totalorder %s209, %s211
      %p215 = scmp.eq.s32.totalorder %s28, 0
      %p216 = por %p214, %p215
      %p217 = scmp.ne.s32.totalorder %s209, %s211
      %p218 = scmp.eq.s32.totalorder %s33, 1
      %p219 = por %p217, %p218
      %p220 = scmp.ne.s32.totalorder %s211, %s212
      %p221 = scmp.eq.s32.totalorder %s33, 0
      %p222 = por %p220, %p221
      %p223 = scmp.ne.s32.totalorder %s211, %s212
      %p224 = scmp.eq.s32.totalorder %s34, 1
      %p225 = por %p223, %p224
      %p227 = scmp.ne.s32.totalorder %s212, %s226
      %p228 = scmp.eq.s32.totalorder %s34, 0
      %p229 = por %p227, %p228
      %s231 = sadd.s32 %s230, 1
      %p234 = scmp.eq.s32.totalorder %s28, 1
      %p235 = scmp.ne.s32.totalorder %s230, %s232
      %p236 = scmp.eq.s32.totalorder %s28, 0
      %p237 = por %p235, %p236
      %p238 = scmp.ne.s32.totalorder %s230, %s232
      %p239 = scmp.eq.s32.totalorder %s33, 1
      %p240 = por %p238, %p239
      %p241 = scmp.ne.s32.totalorder %s232, %s233
      %p242 = scmp.eq.s32.totalorder %s33, 0
      %p243 = por %p241, %p242
      %p244 = scmp.ne.s32.totalorder %s232, %s233
      %p245 = scmp.eq.s32.totalorder %s34, 1
      %p246 = por %p244, %p245
      %p248 = scmp.ne.s32.totalorder %s233, %s247
      %p249 = scmp.eq.s32.totalorder %s34, 0
      %p250 = por %p248, %p249
      %s252 = sadd.s32 %s251, 1
      %p255 = scmp.eq.s32.totalorder %s28, 1
      %p256 = scmp.ne.s32.totalorder %s251, %s253
      %p257 = scmp.eq.s32.totalorder %s28, 0
      %p258 = por %p256, %p257
      %p259 = scmp.ne.s32.totalorder %s251, %s253
      %p260 = scmp.eq.s32.totalorder %s33, 1
      %p261 = por %p259, %p260
      %p262 = scmp.ne.s32.totalorder %s253, %s254
      %p263 = scmp.eq.s32.totalorder %s33, 0
      %p264 = por %p262, %p263
      %p265 = scmp.ne.s32.totalorder %s253, %s254
      %p266 = scmp.eq.s32.totalorder %s34, 1
      %p267 = por %p265, %p266
      %p269 = scmp.ne.s32.totalorder %s254, %s268
      %p270 = scmp.eq.s32.totalorder %s34, 0
      %p271 = por %p269, %p270
      %s273 = sadd.s32 %s272, 1
      %p276 = scmp.eq.s32.totalorder %s28, 1
      %p277 = scmp.ne.s32.totalorder %s272, %s274
      %p278 = scmp.eq.s32.totalorder %s28, 0
      %p279 = por %p277, %p278
      %p280 = scmp.ne.s32.totalorder %s272, %s274
      %p281 = scmp.eq.s32.totalorder %s33, 1
      %p282 = por %p280, %p281
      %p283 = scmp.ne.s32.totalorder %s274, %s275
      %p284 = scmp.eq.s32.totalorder %s33, 0
      %p285 = por %p283, %p284
      %p286 = scmp.ne.s32.totalorder %s274, %s275
      %p287 = scmp.eq.s32.totalorder %s34, 1
      %p288 = por %p286, %p287
      %p290 = scmp.ne.s32.totalorder %s275, %s289
      %p291 = scmp.eq.s32.totalorder %s34, 0
      %p292 = por %p290, %p291
      %s294 = sadd.s32 %s293, 1
      %p297 = scmp.eq.s32.totalorder %s28, 1
      %p298 = scmp.ne.s32.totalorder %s293, %s295
      %p299 = scmp.eq.s32.totalorder %s28, 0
      %p300 = por %p298, %p299
      %p301 = scmp.ne.s32.totalorder %s293, %s295
      %p302 = scmp.eq.s32.totalorder %s33, 1
      %p303 = por %p301, %p302
      %p304 = scmp.ne.s32.totalorder %s295, %s296
      %p305 = scmp.eq.s32.totalorder %s33, 0
      %p306 = por %p304, %p305
      %p307 = scmp.ne.s32.totalorder %s295, %s296
      %p308 = scmp.eq.s32.totalorder %s34, 1
      %p309 = por %p307, %p308
      %p311 = scmp.ne.s32.totalorder %s296, %s310
      %p312 = scmp.eq.s32.totalorder %s34, 0
      %p313 = por %p311, %p312
      %s314 = ssub.s32 %s28, %s35
      %p315 = scmp.eq.s32.totalorder %s314, 0
      %s317 = sadd.s32 %s316, 1
      %s318 = scalar_select %p315, %s316, %s317
      %p321 = pneg %p315
      %p322 = scmp.eq.s32.totalorder %s28, 1
      %p323 = por %p321, %p322
      %p324 = scmp.ne.s32.totalorder %s316, %s319
      %p325 = scmp.eq.s32.totalorder %s28, 0
      %p326 = por %p324, %p325
      %p327 = scmp.ne.s32.totalorder %s316, %s319
      %p328 = scmp.eq.s32.totalorder %s33, 1
      %p329 = por %p327, %p328
      %p330 = scmp.ne.s32.totalorder %s319, %s320
      %p331 = scmp.eq.s32.totalorder %s33, 0
      %p332 = por %p330, %p331
      %p333 = scmp.ne.s32.totalorder %s319, %s320
      %p334 = scmp.eq.s32.totalorder %s34, 1
      %p335 = por %p333, %p334
      %p337 = scmp.ne.s32.totalorder %s320, %s336
      %p338 = scmp.eq.s32.totalorder %s34, 0
      %p339 = por %p337, %p338
      %p340 = scmp.le.s32.totalorder 1, %s28
      %p341 = scmp.lt.s32.totalorder %s28, 3
      %p342 = pnand %p340, %p341
      %p343 = pneg %p342
      // Predicated region
      $region9: #{tpu_custom_call.1} parent=5 // pred_check
        _
      $region10: #{tpu_custom_call.1} parent=5 // pred_check_branch
        %345 = sbr.rel (%p342) target = $region12
      $region11: #{tpu_custom_call.1} parent=5 // pred_region
        %s346 = ssub.s32 %s28, 1
        // Predicated region
        $region13: #{tpu_custom_call.1} parent=11 // pred_check
          %p347 = pneg %p75
        $region14: #{tpu_custom_call.1} parent=11 // pred_check_branch
          %349 = sbr.rel (%p347) target = $region16
        $region15: #{tpu_custom_call.1} parent=11 // pred_region
          %351 = vsyncadd [#allocation6], 0
          %s352 = sshll.u32 %s1, 4
          %s353 = int_to_ptr.hbm [resolvable:$true] %s352
          %s354 = sshll.u32 [#allocation5], 4
          %s355 = int_to_ptr.vmem [resolvable:$true] %s354
          %360 = dma.hbm_to_vmem [thread:$0]  %s353, 1024, %s355, [#allocation6], 64, 64, 4
        $region16: #{tpu_custom_call.1} parent=11 // pred_fallthru
          _
        // Predicated region
        $region17: #{tpu_custom_call.1} parent=11 // pred_check
          %p361 = pneg %p96
        $region18: #{tpu_custom_call.1} parent=11 // pred_check_branch
          %363 = sbr.rel (%p361) target = $region20
        $region19: #{tpu_custom_call.1} parent=11 // pred_region
          _
        $region20: #{tpu_custom_call.1} parent=11 // pred_fallthru
          _
        // Predicated region
        $region21: #{tpu_custom_call.1} parent=11 // pred_check
          %p364 = pneg %p117
        $region22: #{tpu_custom_call.1} parent=11 // pred_check_branch
          %366 = sbr.rel (%p364) target = $region24
        $region23: #{tpu_custom_call.1} parent=11 // pred_region
          %368 = vsyncadd [#allocation6], 0
          %s369 = sshll.u32 %s3, 4
          %s370 = int_to_ptr.hbm [resolvable:$true] %s369
          %s371 = sshll.u32 [#allocation7], 4
          %s372 = int_to_ptr.vmem [resolvable:$true] %s371
          %377 = dma.hbm_to_vmem [thread:$0]  %s370, 1024, %s372, [#allocation6], 64, 64, 4
        $region24: #{tpu_custom_call.1} parent=11 // pred_fallthru
          _
        // Predicated region
        $region25: #{tpu_custom_call.1} parent=11 // pred_check
          %p378 = pneg %p138
        $region26: #{tpu_custom_call.1} parent=11 // pred_check_branch
          %380 = sbr.rel (%p378) target = $region28
        $region27: #{tpu_custom_call.1} parent=11 // pred_region
          _
        $region28: #{tpu_custom_call.1} parent=11 // pred_fallthru
          _
        // Predicated region
        $region29: #{tpu_custom_call.1} parent=11 // pred_check
          %p381 = pneg %p159
        $region30: #{tpu_custom_call.1} parent=11 // pred_check_branch
          %383 = sbr.rel (%p381) target = $region32
        $region31: #{tpu_custom_call.1} parent=11 // pred_region
          %385 = vsyncadd [#allocation9], 0
          %s386 = sshll.u32 %s5, 4
          %s387 = int_to_ptr.hbm [resolvable:$true] %s386
          %s388 = sshll.u32 [#allocation8], 4
          %s389 = int_to_ptr.vmem [resolvable:$true] %s388
          %394 = dma.hbm_to_vmem [thread:$0]  %s387, 1024, %s389, [#allocation9], 64, 64, 4
        $region32: #{tpu_custom_call.1} parent=11 // pred_fallthru
          _
        // Predicated region
        $region33: #{tpu_custom_call.1} parent=11 // pred_check
          %p395 = pneg %p180
        $region34: #{tpu_custom_call.1} parent=11 // pred_check_branch
          %397 = sbr.rel (%p395) target = $region36
        $region35: #{tpu_custom_call.1} parent=11 // pred_region
          _
        $region36: #{tpu_custom_call.1} parent=11 // pred_fallthru
          _
        // Predicated region
        $region37: #{tpu_custom_call.1} parent=11 // pred_check
          %p398 = pneg %p201
        $region38: #{tpu_custom_call.1} parent=11 // pred_check_branch
          %400 = sbr.rel (%p398) target = $region40
        $region39: #{tpu_custom_call.1} parent=11 // pred_region
          %402 = vsyncadd [#allocation9], 0
          %s403 = sshll.u32 %s7, 4
          %s404 = int_to_ptr.hbm [resolvable:$true] %s403
          %s405 = sshll.u32 [#allocation10], 4
          %s406 = int_to_ptr.vmem [resolvable:$true] %s405
          %411 = dma.hbm_to_vmem [thread:$0]  %s404, 1024, %s406, [#allocation9], 64, 64, 4
        $region40: #{tpu_custom_call.1} parent=11 // pred_fallthru
          _
        // Predicated region
        $region41: #{tpu_custom_call.1} parent=11 // pred_check
          %p412 = pneg %p222
        $region42: #{tpu_custom_call.1} parent=11 // pred_check_branch
          %414 = sbr.rel (%p412) target = $region44
        $region43: #{tpu_custom_call.1} parent=11 // pred_region
          _
        $region44: #{tpu_custom_call.1} parent=11 // pred_fallthru
          _
        // Predicated region
        $region45: #{tpu_custom_call.1} parent=11 // pred_check
          %p415 = pneg %p243
        $region46: #{tpu_custom_call.1} parent=11 // pred_check_branch
          %417 = sbr.rel (%p415) target = $region48
        $region47: #{tpu_custom_call.1} parent=11 // pred_region
          %419 = vsyncadd [#allocation12], 0
          %s420 = sshll.u32 %s9, 4
          %s421 = int_to_ptr.hbm [resolvable:$true] %s420
          %s422 = sshll.u32 [#allocation11], 4
          %s423 = int_to_ptr.vmem [resolvable:$true] %s422
          %428 = dma.hbm_to_vmem [thread:$0]  %s421, 1024, %s423, [#allocation12], 64, 64, 4
        $region48: #{tpu_custom_call.1} parent=11 // pred_fallthru
          _
        // Predicated region
        $region49: #{tpu_custom_call.1} parent=11 // pred_check
          %p429 = pneg %p264
        $region50: #{tpu_custom_call.1} parent=11 // pred_check_branch
          %431 = sbr.rel (%p429) target = $region52
        $region51: #{tpu_custom_call.1} parent=11 // pred_region
          _
        $region52: #{tpu_custom_call.1} parent=11 // pred_fallthru
          _
        // Predicated region
        $region53: #{tpu_custom_call.1} parent=11 // pred_check
          %p432 = pneg %p285
        $region54: #{tpu_custom_call.1} parent=11 // pred_check_branch
          %434 = sbr.rel (%p432) target = $region56
        $region55: #{tpu_custom_call.1} parent=11 // pred_region
          %436 = vsyncadd [#allocation12], 0
          %s437 = sshll.u32 %s11, 4
          %s438 = int_to_ptr.hbm [resolvable:$true] %s437
          %s439 = sshll.u32 [#allocation13], 4
          %s440 = int_to_ptr.vmem [resolvable:$true] %s439
          %445 = dma.hbm_to_vmem [thread:$0]  %s438, 1024, %s440, [#allocation12], 64, 64, 4
        $region56: #{tpu_custom_call.1} parent=11 // pred_fallthru
          _
        // Predicated region
        $region57: #{tpu_custom_call.1} parent=11 // pred_check
          %p446 = pneg %p306
        $region58: #{tpu_custom_call.1} parent=11 // pred_check_branch
          %448 = sbr.rel (%p446) target = $region60
        $region59: #{tpu_custom_call.1} parent=11 // pred_region
          _
        $region60: #{tpu_custom_call.1} parent=11 // pred_fallthru
          _
      $region12: #{tpu_custom_call.1} parent=5 // pred_fallthru
        _
      %p449 = scmp.lt.s32.totalorder %s28, 2
      // Predicated region
      $region61: #{tpu_custom_call.1} parent=5 // pred_check
        %p450 = pneg %p449
      $region62: #{tpu_custom_call.1} parent=5 // pred_check_branch
        %452 = sbr.rel (%p450) target = $region64
      $region63: #{tpu_custom_call.1} parent=5 // pred_region
        // Predicated region
        $region65: #{tpu_custom_call.1} parent=63 // pred_check
          %p453 = pneg %p48
        $region66: #{tpu_custom_call.1} parent=63 // pred_check_branch
          %455 = sbr.rel (%p453) target = $region68
        $region67: #{tpu_custom_call.1} parent=63 // pred_region
          %s456 = sand.u32 %s38, 1
          %s457 = scalar_lea.sflag [#allocation3], %s456
          %s458 = sand.u32 %s38, 1
          %s459 = smul.addr %s458, 128
          %s460 = scalar_lea.vmem [#allocation2], %s459
          %s461 = smul.u32 16, %s28
          %463 = vsyncadd %s457, 0
          %s464 = smul.addr %s461, 8
          %s465 = scalar_lea.hbm %s0, %s464
          %s466 = sshll.u32 %s465, 4
          %s467 = int_to_ptr.hbm [resolvable:$true] %s466
          %s468 = sshll.u32 %s460, 4
          %s469 = int_to_ptr.vmem [resolvable:$true] %s468
          %474 = dma.hbm_to_vmem [thread:$0]  %s467, 2048, %s469, %s457, 128, 128, 8
        $region68: #{tpu_custom_call.1} parent=63 // pred_fallthru
          _
      $region64: #{tpu_custom_call.1} parent=5 // pred_fallthru
        _
      %p475 = scmp.le.s32.totalorder 1, %s28
      %p476 = scmp.lt.s32.totalorder %s28, 3
      %p477 = pnand %p475, %p476
      %p478 = pneg %p477
      // Predicated region
      $region69: #{tpu_custom_call.1} parent=5 // pred_check
        _
      $region70: #{tpu_custom_call.1} parent=5 // pred_check_branch
        %480 = sbr.rel (%p477) target = $region72
      $region71: #{tpu_custom_call.1} parent=5 // pred_region
        %s481 = ssub.s32 %s28, 1
        %s482 = sand.u32 %s41, 1
        %s483 = scalar_lea.sflag [#allocation3], %s482
        %s484 = sand.u32 %s41, 1
        %s485 = smul.addr %s484, 128
        %s486 = scalar_lea.vmem [#allocation2], %s485
        // Predicated region
        $region73: #{tpu_custom_call.1} parent=71 // pred_check
          %p487 = pneg %p54
        $region74: #{tpu_custom_call.1} parent=71 // pred_check_branch
          %489 = sbr.rel (%p487) target = $region76
        $region75: #{tpu_custom_call.1} parent=71 // pred_region
          %491 = dma.done %s483, 2048
        $region76: #{tpu_custom_call.1} parent=71 // pred_fallthru
          _
        // Predicated region
        $region77: #{tpu_custom_call.1} parent=71 // pred_check
          %p492 = pneg %p75
        $region78: #{tpu_custom_call.1} parent=71 // pred_check_branch
          %494 = sbr.rel (%p492) target = $region80
        $region79: #{tpu_custom_call.1} parent=71 // pred_region
          %496 = dma.done [#allocation6], 1024
        $region80: #{tpu_custom_call.1} parent=71 // pred_fallthru
          _
        // Predicated region
        $region81: #{tpu_custom_call.1} parent=71 // pred_check
          %p497 = pneg %p117
        $region82: #{tpu_custom_call.1} parent=71 // pred_check_branch
          %499 = sbr.rel (%p497) target = $region84
        $region83: #{tpu_custom_call.1} parent=71 // pred_region
          %501 = dma.done [#allocation6], 1024
        $region84: #{tpu_custom_call.1} parent=71 // pred_fallthru
          _
        // Predicated region
        $region85: #{tpu_custom_call.1} parent=71 // pred_check
          %p502 = pneg %p159
        $region86: #{tpu_custom_call.1} parent=71 // pred_check_branch
          %504 = sbr.rel (%p502) target = $region88
        $region87: #{tpu_custom_call.1} parent=71 // pred_region
          %506 = dma.done [#allocation9], 1024
        $region88: #{tpu_custom_call.1} parent=71 // pred_fallthru
          _
        // Predicated region
        $region89: #{tpu_custom_call.1} parent=71 // pred_check
          %p507 = pneg %p201
        $region90: #{tpu_custom_call.1} parent=71 // pred_check_branch
          %509 = sbr.rel (%p507) target = $region92
        $region91: #{tpu_custom_call.1} parent=71 // pred_region
          %511 = dma.done [#allocation9], 1024
        $region92: #{tpu_custom_call.1} parent=71 // pred_fallthru
          _
        // Predicated region
        $region93: #{tpu_custom_call.1} parent=71 // pred_check
          %p512 = pneg %p243
        $region94: #{tpu_custom_call.1} parent=71 // pred_check_branch
          %514 = sbr.rel (%p512) target = $region96
        $region95: #{tpu_custom_call.1} parent=71 // pred_region
          %516 = dma.done [#allocation12], 1024
        $region96: #{tpu_custom_call.1} parent=71 // pred_fallthru
          _
        // Predicated region
        $region97: #{tpu_custom_call.1} parent=71 // pred_check
          %p517 = pneg %p285
        $region98: #{tpu_custom_call.1} parent=71 // pred_check_branch
          %519 = sbr.rel (%p517) target = $region100
        $region99: #{tpu_custom_call.1} parent=71 // pred_region
          %521 = dma.done [#allocation12], 1024
        $region100: #{tpu_custom_call.1} parent=71 // pred_fallthru
          _
        %s522 = sand.u32 %s41, 1
        %s523 = scalar_lea.sflag [#allocation3], %s522
        %s524 = sand.u32 %s41, 1
        %s525 = smul.addr %s524, 128
        %s526 = scalar_lea.vmem [#allocation2], %s525
        %p527 = pneg %p54
        %p528 = pneg %p51
        %p529 = pneg %p75
        %p530 = pneg %p72
        %p531 = pneg %p96
        %p532 = pneg %p93
        %p533 = pneg %p117
        %p534 = pneg %p114
        %p535 = pneg %p138
        %p536 = pneg %p135
        %p537 = pneg %p159
        %p538 = pneg %p156
        %p539 = pneg %p180
        %p540 = pneg %p177
        %p541 = pneg %p201
        %p542 = pneg %p198
        %p543 = pneg %p222
        %p544 = pneg %p219
        %p545 = pneg %p243
        %p546 = pneg %p240
        %p547 = pneg %p264
        %p548 = pneg %p261
        %p549 = pneg %p285
        %p550 = pneg %p282
        %p551 = pneg %p306
        %p552 = pneg %p303
        %p553 = pneg %p332
        %p554 = pneg %p329
        %s555 = sand.u32 %s319, 1
        %s556 = scalar_lea.sflag [#allocation4], %s555
        %s557 = sand.u32 %s319, 1
        %s558 = smul.addr %s557, 128
        %s559 = scalar_lea.vmem [#allocation14], %s558
        %s560 = smul.u32 16, %s33
        %s561 = smul.u32 16, %s33
        %v562 = vld [vmem:[%s486] sm:$0xff]
        %v563 = vld [vmem:[%s486 + $0x8] sm:$0xff]
        %v564 = vld [vmem:[%s486 + $0x10] sm:$0xff]
        %v565 = vld [vmem:[%s486 + $0x18] sm:$0xff]
        %v566 = vld [vmem:[%s486 + $0x20] sm:$0xff]
        %v567 = vld [vmem:[%s486 + $0x28] sm:$0xff]
        %v568 = vld [vmem:[%s486 + $0x30] sm:$0xff]
        %v569 = vld [vmem:[%s486 + $0x38] sm:$0xff]
        %v570 = vld [vmem:[%s486 + $0x40] sm:$0xff]
        %v571 = vld [vmem:[%s486 + $0x48] sm:$0xff]
        %v572 = vld [vmem:[%s486 + $0x50] sm:$0xff]
        %v573 = vld [vmem:[%s486 + $0x58] sm:$0xff]
        %v574 = vld [vmem:[%s486 + $0x60] sm:$0xff]
        %v575 = vld [vmem:[%s486 + $0x68] sm:$0xff]
        %v576 = vld [vmem:[%s486 + $0x70] sm:$0xff]
        %v577 = vld [vmem:[%s486 + $0x78] sm:$0xff]
        %v578 = vpack.c.bf16 %v563, %v562
        %v579 = vpack.c.bf16 %v565, %v564
        %v580 = vpack.c.bf16 %v567, %v566
        %v581 = vpack.c.bf16 %v569, %v568
        %v582 = vpack.c.bf16 %v571, %v570
        %v583 = vpack.c.bf16 %v573, %v572
        %v584 = vpack.c.bf16 %v575, %v574
        %v585 = vpack.c.bf16 %v577, %v576
        %v586 = vld [vmem:[#allocation5] sm:$0xf]
        %v587 = vld [vmem:[#allocation5 + $0x4] sm:$0xf]
        %v588 = vld [vmem:[#allocation5 + $0x8] sm:$0xf]
        %v589 = vld [vmem:[#allocation5 + $0xc] sm:$0xf]
        %v590 = vld [vmem:[#allocation5 + $0x10] sm:$0xf]
        %v591 = vld [vmem:[#allocation5 + $0x14] sm:$0xf]
        %v592 = vld [vmem:[#allocation5 + $0x18] sm:$0xf]
        %v593 = vld [vmem:[#allocation5 + $0x1c] sm:$0xf]
        %v594 = vld [vmem:[#allocation5 + $0x20] sm:$0xf]
        %v595 = vld [vmem:[#allocation5 + $0x24] sm:$0xf]
        %v596 = vld [vmem:[#allocation5 + $0x28] sm:$0xf]
        %v597 = vld [vmem:[#allocation5 + $0x2c] sm:$0xf]
        %v598 = vld [vmem:[#allocation5 + $0x30] sm:$0xf]
        %v599 = vld [vmem:[#allocation5 + $0x34] sm:$0xf]
        %v600 = vld [vmem:[#allocation5 + $0x38] sm:$0xf]
        %v601 = vld [vmem:[#allocation5 + $0x3c] sm:$0xf]
        %v602 = vld [vmem:[%s2] sm:$0x1]
        %v604 = vperm.slane %v602, 0
        %v622 = vunpack.c.l.b16 %v586
        %v623 = vunpack.c.l.b16 %v587
        %v624 = vunpack.c.l.b16 %v588
        %v625 = vunpack.c.l.b16 %v589
        %v626 = vunpack.c.l.b16 %v590
        %v627 = vunpack.c.l.b16 %v591
        %v628 = vunpack.c.l.b16 %v592
        %v629 = vunpack.c.l.b16 %v593
        %v630 = vunpack.c.l.b16 %v594
        %v631 = vunpack.c.l.b16 %v595
        %v632 = vunpack.c.l.b16 %v596
        %v633 = vunpack.c.l.b16 %v597
        %v634 = vunpack.c.l.b16 %v598
        %v635 = vunpack.c.l.b16 %v599
        %v636 = vunpack.c.l.b16 %v600
        %v637 = vunpack.c.l.b16 %v601
        %v638 = vpack.c.b16 %v623, %v622
        %v639 = vpack.c.b16 %v625, %v624
        %v640 = vpack.c.b16 %v627, %v626
        %v641 = vpack.c.b16 %v629, %v628
        %v642 = vpack.c.b16 %v631, %v630
        %v643 = vpack.c.b16 %v633, %v632
        %v644 = vpack.c.b16 %v635, %v634
        %v645 = vpack.c.b16 %v637, %v636
        %654 = vmatpush.bf16.msra.mxu0 %v645
        %655 = vmatpush.bf16.msra.mxu0 %v644
        %656 = vmatpush.bf16.msra.mxu0 %v643
        %657 = vmatpush.bf16.msra.mxu0 %v642
        %658 = vmatpush.bf16.msra.mxu0 %v641
        %659 = vmatpush.bf16.msra.mxu0 %v640
        %660 = vmatpush.bf16.msra.mxu0 %v639
        %661 = vmatpush.bf16.msra.mxu0 %v638
        %662 = vmatmul.bf16.gmra.mxu0 %v578
        %v663 = vpop.f32.mrf.mxu0
        %v664 = vadd.f32 %v604, %v663
        %v665 = vpop.f32.mrf.mxu0
        %v666 = vadd.f32 %v604, %v665
        %667 = vmatmul.bf16.gmra.mxu0 %v579
        %v668 = vpop.f32.mrf.mxu0
        %v669 = vadd.f32 %v604, %v668
        %v670 = vpop.f32.mrf.mxu0
        %v671 = vadd.f32 %v604, %v670
        %672 = vmatmul.bf16.gmra.mxu0 %v580
        %v673 = vpop.f32.mrf.mxu0
        %v674 = vadd.f32 %v604, %v673
        %v675 = vpop.f32.mrf.mxu0
        %v676 = vadd.f32 %v604, %v675
        %677 = vmatmul.bf16.gmra.mxu0 %v581
        %v678 = vpop.f32.mrf.mxu0
        %v679 = vadd.f32 %v604, %v678
        %v680 = vpop.f32.mrf.mxu0
        %v681 = vadd.f32 %v604, %v680
        %682 = vmatmul.bf16.gmra.mxu0 %v582
        %v683 = vpop.f32.mrf.mxu0
        %v684 = vadd.f32 %v604, %v683
        %v685 = vpop.f32.mrf.mxu0
        %v686 = vadd.f32 %v604, %v685
        %687 = vmatmul.bf16.gmra.mxu0 %v583
        %v688 = vpop.f32.mrf.mxu0
        %v689 = vadd.f32 %v604, %v688
        %v690 = vpop.f32.mrf.mxu0
        %v691 = vadd.f32 %v604, %v690
        %692 = vmatmul.bf16.gmra.mxu0 %v584
        %v693 = vpop.f32.mrf.mxu0
        %v694 = vadd.f32 %v604, %v693
        %v695 = vpop.f32.mrf.mxu0
        %v696 = vadd.f32 %v604, %v695
        %697 = vmatmul.bf16.gmra.mxu0 %v585
        %v698 = vpop.f32.mrf.mxu0
        %v699 = vadd.f32 %v604, %v698
        %v700 = vpop.f32.mrf.mxu0
        %v701 = vadd.f32 %v604, %v700
        %702 = vdwg.mxu0
        %v703 = vmax.f32 %v664, 0.0
        %v704 = vmax.f32 %v666, 0.0
        %v705 = vmax.f32 %v669, 0.0
        %v706 = vmax.f32 %v671, 0.0
        %v707 = vmax.f32 %v674, 0.0
        %v708 = vmax.f32 %v676, 0.0
        %v709 = vmax.f32 %v679, 0.0
        %v710 = vmax.f32 %v681, 0.0
        %v711 = vmax.f32 %v684, 0.0
        %v712 = vmax.f32 %v686, 0.0
        %v713 = vmax.f32 %v689, 0.0
        %v714 = vmax.f32 %v691, 0.0
        %v715 = vmax.f32 %v694, 0.0
        %v716 = vmax.f32 %v696, 0.0
        %v717 = vmax.f32 %v699, 0.0
        %v718 = vmax.f32 %v701, 0.0
        %v719 = vpack.c.bf16 %v704, %v703
        %v720 = vpack.c.bf16 %v706, %v705
        %v721 = vpack.c.bf16 %v708, %v707
        %v722 = vpack.c.bf16 %v710, %v709
        %v723 = vpack.c.bf16 %v712, %v711
        %v724 = vpack.c.bf16 %v714, %v713
        %v725 = vpack.c.bf16 %v716, %v715
        %v726 = vpack.c.bf16 %v718, %v717
        %v727 = vld [vmem:[#allocation7] sm:$0xf]
        %v728 = vld [vmem:[#allocation7 + $0x4] sm:$0xf]
        %v729 = vld [vmem:[#allocation7 + $0x8] sm:$0xf]
        %v730 = vld [vmem:[#allocation7 + $0xc] sm:$0xf]
        %v731 = vld [vmem:[#allocation7 + $0x10] sm:$0xf]
        %v732 = vld [vmem:[#allocation7 + $0x14] sm:$0xf]
        %v733 = vld [vmem:[#allocation7 + $0x18] sm:$0xf]
        %v734 = vld [vmem:[#allocation7 + $0x1c] sm:$0xf]
        %v735 = vld [vmem:[#allocation7 + $0x20] sm:$0xf]
        %v736 = vld [vmem:[#allocation7 + $0x24] sm:$0xf]
        %v737 = vld [vmem:[#allocation7 + $0x28] sm:$0xf]
        %v738 = vld [vmem:[#allocation7 + $0x2c] sm:$0xf]
        %v739 = vld [vmem:[#allocation7 + $0x30] sm:$0xf]
        %v740 = vld [vmem:[#allocation7 + $0x34] sm:$0xf]
        %v741 = vld [vmem:[#allocation7 + $0x38] sm:$0xf]
        %v742 = vld [vmem:[#allocation7 + $0x3c] sm:$0xf]
        %v743 = vld [vmem:[%s4] sm:$0x1]
        %v745 = vperm.slane %v743, 0
        %v763 = vunpack.c.l.b16 %v727
        %v764 = vunpack.c.l.b16 %v728
        %v765 = vunpack.c.l.b16 %v729
        %v766 = vunpack.c.l.b16 %v730
        %v767 = vunpack.c.l.b16 %v731
        %v768 = vunpack.c.l.b16 %v732
        %v769 = vunpack.c.l.b16 %v733
        %v770 = vunpack.c.l.b16 %v734
        %v771 = vunpack.c.l.b16 %v735
        %v772 = vunpack.c.l.b16 %v736
        %v773 = vunpack.c.l.b16 %v737
        %v774 = vunpack.c.l.b16 %v738
        %v775 = vunpack.c.l.b16 %v739
        %v776 = vunpack.c.l.b16 %v740
        %v777 = vunpack.c.l.b16 %v741
        %v778 = vunpack.c.l.b16 %v742
        %v779 = vpack.c.b16 %v764, %v763
        %v780 = vpack.c.b16 %v766, %v765
        %v781 = vpack.c.b16 %v768, %v767
        %v782 = vpack.c.b16 %v770, %v769
        %v783 = vpack.c.b16 %v772, %v771
        %v784 = vpack.c.b16 %v774, %v773
        %v785 = vpack.c.b16 %v776, %v775
        %v786 = vpack.c.b16 %v778, %v777
        %795 = vmatpush.bf16.msra.mxu0 %v786
        %796 = vmatpush.bf16.msra.mxu0 %v785
        %797 = vmatpush.bf16.msra.mxu0 %v784
        %798 = vmatpush.bf16.msra.mxu0 %v783
        %799 = vmatpush.bf16.msra.mxu0 %v782
        %800 = vmatpush.bf16.msra.mxu0 %v781
        %801 = vmatpush.bf16.msra.mxu0 %v780
        %802 = vmatpush.bf16.msra.mxu0 %v779
        %803 = vmatmul.bf16.gmra.mxu0 %v719
        %v804 = vpop.f32.mrf.mxu0
        %v805 = vadd.f32 %v745, %v804
        %v806 = vpop.f32.mrf.mxu0
        %v807 = vadd.f32 %v745, %v806
        %808 = vmatmul.bf16.gmra.mxu0 %v720
        %v809 = vpop.f32.mrf.mxu0
        %v810 = vadd.f32 %v745, %v809
        %v811 = vpop.f32.mrf.mxu0
        %v812 = vadd.f32 %v745, %v811
        %813 = vmatmul.bf16.gmra.mxu0 %v721
        %v814 = vpop.f32.mrf.mxu0
        %v815 = vadd.f32 %v745, %v814
        %v816 = vpop.f32.mrf.mxu0
        %v817 = vadd.f32 %v745, %v816
        %818 = vmatmul.bf16.gmra.mxu0 %v722
        %v819 = vpop.f32.mrf.mxu0
        %v820 = vadd.f32 %v745, %v819
        %v821 = vpop.f32.mrf.mxu0
        %v822 = vadd.f32 %v745, %v821
        %823 = vmatmul.bf16.gmra.mxu0 %v723
        %v824 = vpop.f32.mrf.mxu0
        %v825 = vadd.f32 %v745, %v824
        %v826 = vpop.f32.mrf.mxu0
        %v827 = vadd.f32 %v745, %v826
        %828 = vmatmul.bf16.gmra.mxu0 %v724
        %v829 = vpop.f32.mrf.mxu0
        %v830 = vadd.f32 %v745, %v829
        %v831 = vpop.f32.mrf.mxu0
        %v832 = vadd.f32 %v745, %v831
        %833 = vmatmul.bf16.gmra.mxu0 %v725
        %v834 = vpop.f32.mrf.mxu0
        %v835 = vadd.f32 %v745, %v834
        %v836 = vpop.f32.mrf.mxu0
        %v837 = vadd.f32 %v745, %v836
        %838 = vmatmul.bf16.gmra.mxu0 %v726
        %v839 = vpop.f32.mrf.mxu0
        %v840 = vadd.f32 %v745, %v839
        %v841 = vpop.f32.mrf.mxu0
        %v842 = vadd.f32 %v745, %v841
        %843 = vdwg.mxu0
        %v844 = vmax.f32 %v805, 0.0
        %v845 = vmax.f32 %v807, 0.0
        %v846 = vmax.f32 %v810, 0.0
        %v847 = vmax.f32 %v812, 0.0
        %v848 = vmax.f32 %v815, 0.0
        %v849 = vmax.f32 %v817, 0.0
        %v850 = vmax.f32 %v820, 0.0
        %v851 = vmax.f32 %v822, 0.0
        %v852 = vmax.f32 %v825, 0.0
        %v853 = vmax.f32 %v827, 0.0
        %v854 = vmax.f32 %v830, 0.0
        %v855 = vmax.f32 %v832, 0.0
        %v856 = vmax.f32 %v835, 0.0
        %v857 = vmax.f32 %v837, 0.0
        %v858 = vmax.f32 %v840, 0.0
        %v859 = vmax.f32 %v842, 0.0
        %v860 = vpack.c.bf16 %v845, %v844
        %v861 = vpack.c.bf16 %v847, %v846
        %v862 = vpack.c.bf16 %v849, %v848
        %v863 = vpack.c.bf16 %v851, %v850
        %v864 = vpack.c.bf16 %v853, %v852
        %v865 = vpack.c.bf16 %v855, %v854
        %v866 = vpack.c.bf16 %v857, %v856
        %v867 = vpack.c.bf16 %v859, %v858
        %v868 = vld [vmem:[#allocation8] sm:$0xf]
        %v869 = vld [vmem:[#allocation8 + $0x4] sm:$0xf]
        %v870 = vld [vmem:[#allocation8 + $0x8] sm:$0xf]
        %v871 = vld [vmem:[#allocation8 + $0xc] sm:$0xf]
        %v872 = vld [vmem:[#allocation8 + $0x10] sm:$0xf]
        %v873 = vld [vmem:[#allocation8 + $0x14] sm:$0xf]
        %v874 = vld [vmem:[#allocation8 + $0x18] sm:$0xf]
        %v875 = vld [vmem:[#allocation8 + $0x1c] sm:$0xf]
        %v876 = vld [vmem:[#allocation8 + $0x20] sm:$0xf]
        %v877 = vld [vmem:[#allocation8 + $0x24] sm:$0xf]
        %v878 = vld [vmem:[#allocation8 + $0x28] sm:$0xf]
        %v879 = vld [vmem:[#allocation8 + $0x2c] sm:$0xf]
        %v880 = vld [vmem:[#allocation8 + $0x30] sm:$0xf]
        %v881 = vld [vmem:[#allocation8 + $0x34] sm:$0xf]
        %v882 = vld [vmem:[#allocation8 + $0x38] sm:$0xf]
        %v883 = vld [vmem:[#allocation8 + $0x3c] sm:$0xf]
        %v884 = vld [vmem:[%s6] sm:$0x1]
        %v886 = vperm.slane %v884, 0
        %v904 = vunpack.c.l.b16 %v868
        %v905 = vunpack.c.l.b16 %v869
        %v906 = vunpack.c.l.b16 %v870
        %v907 = vunpack.c.l.b16 %v871
        %v908 = vunpack.c.l.b16 %v872
        %v909 = vunpack.c.l.b16 %v873
        %v910 = vunpack.c.l.b16 %v874
        %v911 = vunpack.c.l.b16 %v875
        %v912 = vunpack.c.l.b16 %v876
        %v913 = vunpack.c.l.b16 %v877
        %v914 = vunpack.c.l.b16 %v878
        %v915 = vunpack.c.l.b16 %v879
        %v916 = vunpack.c.l.b16 %v880
        %v917 = vunpack.c.l.b16 %v881
        %v918 = vunpack.c.l.b16 %v882
        %v919 = vunpack.c.l.b16 %v883
        %v920 = vpack.c.b16 %v905, %v904
        %v921 = vpack.c.b16 %v907, %v906
        %v922 = vpack.c.b16 %v909, %v908
        %v923 = vpack.c.b16 %v911, %v910
        %v924 = vpack.c.b16 %v913, %v912
        %v925 = vpack.c.b16 %v915, %v914
        %v926 = vpack.c.b16 %v917, %v916
        %v927 = vpack.c.b16 %v919, %v918
        %936 = vmatpush.bf16.msra.mxu0 %v927
        %937 = vmatpush.bf16.msra.mxu0 %v926
        %938 = vmatpush.bf16.msra.mxu0 %v925
        %939 = vmatpush.bf16.msra.mxu0 %v924
        %940 = vmatpush.bf16.msra.mxu0 %v923
        %941 = vmatpush.bf16.msra.mxu0 %v922
        %942 = vmatpush.bf16.msra.mxu0 %v921
        %943 = vmatpush.bf16.msra.mxu0 %v920
        %944 = vmatmul.bf16.gmra.mxu0 %v860
        %v945 = vpop.f32.mrf.mxu0
        %v946 = vadd.f32 %v886, %v945
        %v947 = vpop.f32.mrf.mxu0
        %v948 = vadd.f32 %v886, %v947
        %949 = vmatmul.bf16.gmra.mxu0 %v861
        %v950 = vpop.f32.mrf.mxu0
        %v951 = vadd.f32 %v886, %v950
        %v952 = vpop.f32.mrf.mxu0
        %v953 = vadd.f32 %v886, %v952
        %954 = vmatmul.bf16.gmra.mxu0 %v862
        %v955 = vpop.f32.mrf.mxu0
        %v956 = vadd.f32 %v886, %v955
        %v957 = vpop.f32.mrf.mxu0
        %v958 = vadd.f32 %v886, %v957
        %959 = vmatmul.bf16.gmra.mxu0 %v863
        %v960 = vpop.f32.mrf.mxu0
        %v961 = vadd.f32 %v886, %v960
        %v962 = vpop.f32.mrf.mxu0
        %v963 = vadd.f32 %v886, %v962
        %964 = vmatmul.bf16.gmra.mxu0 %v864
        %v965 = vpop.f32.mrf.mxu0
        %v966 = vadd.f32 %v886, %v965
        %v967 = vpop.f32.mrf.mxu0
        %v968 = vadd.f32 %v886, %v967
        %969 = vmatmul.bf16.gmra.mxu0 %v865
        %v970 = vpop.f32.mrf.mxu0
        %v971 = vadd.f32 %v886, %v970
        %v972 = vpop.f32.mrf.mxu0
        %v973 = vadd.f32 %v886, %v972
        %974 = vmatmul.bf16.gmra.mxu0 %v866
        %v975 = vpop.f32.mrf.mxu0
        %v976 = vadd.f32 %v886, %v975
        %v977 = vpop.f32.mrf.mxu0
        %v978 = vadd.f32 %v886, %v977
        %979 = vmatmul.bf16.gmra.mxu0 %v867
        %v980 = vpop.f32.mrf.mxu0
        %v981 = vadd.f32 %v886, %v980
        %v982 = vpop.f32.mrf.mxu0
        %v983 = vadd.f32 %v886, %v982
        %984 = vdwg.mxu0
        %v985 = vmax.f32 %v946, 0.0
        %v986 = vmax.f32 %v948, 0.0
        %v987 = vmax.f32 %v951, 0.0
        %v988 = vmax.f32 %v953, 0.0
        %v989 = vmax.f32 %v956, 0.0
        %v990 = vmax.f32 %v958, 0.0
        %v991 = vmax.f32 %v961, 0.0
        %v992 = vmax.f32 %v963, 0.0
        %v993 = vmax.f32 %v966, 0.0
        %v994 = vmax.f32 %v968, 0.0
        %v995 = vmax.f32 %v971, 0.0
        %v996 = vmax.f32 %v973, 0.0
        %v997 = vmax.f32 %v976, 0.0
        %v998 = vmax.f32 %v978, 0.0
        %v999 = vmax.f32 %v981, 0.0
        %v1000 = vmax.f32 %v983, 0.0
        %v1001 = vpack.c.bf16 %v986, %v985
        %v1002 = vpack.c.bf16 %v988, %v987
        %v1003 = vpack.c.bf16 %v990, %v989
        %v1004 = vpack.c.bf16 %v992, %v991
        %v1005 = vpack.c.bf16 %v994, %v993
        %v1006 = vpack.c.bf16 %v996, %v995
        %v1007 = vpack.c.bf16 %v998, %v997
        %v1008 = vpack.c.bf16 %v1000, %v999
        %v1009 = vld [vmem:[#allocation10] sm:$0xf]
        %v1010 = vld [vmem:[#allocation10 + $0x4] sm:$0xf]
        %v1011 = vld [vmem:[#allocation10 + $0x8] sm:$0xf]
        %v1012 = vld [vmem:[#allocation10 + $0xc] sm:$0xf]
        %v1013 = vld [vmem:[#allocation10 + $0x10] sm:$0xf]
        %v1014 = vld [vmem:[#allocation10 + $0x14] sm:$0xf]
        %v1015 = vld [vmem:[#allocation10 + $0x18] sm:$0xf]
        %v1016 = vld [vmem:[#allocation10 + $0x1c] sm:$0xf]
        %v1017 = vld [vmem:[#allocation10 + $0x20] sm:$0xf]
        %v1018 = vld [vmem:[#allocation10 + $0x24] sm:$0xf]
        %v1019 = vld [vmem:[#allocation10 + $0x28] sm:$0xf]
        %v1020 = vld [vmem:[#allocation10 + $0x2c] sm:$0xf]
        %v1021 = vld [vmem:[#allocation10 + $0x30] sm:$0xf]
        %v1022 = vld [vmem:[#allocation10 + $0x34] sm:$0xf]
        %v1023 = vld [vmem:[#allocation10 + $0x38] sm:$0xf]
        %v1024 = vld [vmem:[#allocation10 + $0x3c] sm:$0xf]
        %v1025 = vld [vmem:[%s8] sm:$0x1]
        %v1027 = vperm.slane %v1025, 0
        %v1045 = vunpack.c.l.b16 %v1009
        %v1046 = vunpack.c.l.b16 %v1010
        %v1047 = vunpack.c.l.b16 %v1011
        %v1048 = vunpack.c.l.b16 %v1012
        %v1049 = vunpack.c.l.b16 %v1013
        %v1050 = vunpack.c.l.b16 %v1014
        %v1051 = vunpack.c.l.b16 %v1015
        %v1052 = vunpack.c.l.b16 %v1016
        %v1053 = vunpack.c.l.b16 %v1017
        %v1054 = vunpack.c.l.b16 %v1018
        %v1055 = vunpack.c.l.b16 %v1019
        %v1056 = vunpack.c.l.b16 %v1020
        %v1057 = vunpack.c.l.b16 %v1021
        %v1058 = vunpack.c.l.b16 %v1022
        %v1059 = vunpack.c.l.b16 %v1023
        %v1060 = vunpack.c.l.b16 %v1024
        %v1061 = vpack.c.b16 %v1046, %v1045
        %v1062 = vpack.c.b16 %v1048, %v1047
        %v1063 = vpack.c.b16 %v1050, %v1049
        %v1064 = vpack.c.b16 %v1052, %v1051
        %v1065 = vpack.c.b16 %v1054, %v1053
        %v1066 = vpack.c.b16 %v1056, %v1055
        %v1067 = vpack.c.b16 %v1058, %v1057
        %v1068 = vpack.c.b16 %v1060, %v1059
        %1077 = vmatpush.bf16.msra.mxu0 %v1068
        %1078 = vmatpush.bf16.msra.mxu0 %v1067
        %1079 = vmatpush.bf16.msra.mxu0 %v1066
        %1080 = vmatpush.bf16.msra.mxu0 %v1065
        %1081 = vmatpush.bf16.msra.mxu0 %v1064
        %1082 = vmatpush.bf16.msra.mxu0 %v1063
        %1083 = vmatpush.bf16.msra.mxu0 %v1062
        %1084 = vmatpush.bf16.msra.mxu0 %v1061
        %1085 = vmatmul.bf16.gmra.mxu0 %v1001
        %v1086 = vpop.f32.mrf.mxu0
        %v1087 = vadd.f32 %v1027, %v1086
        %v1088 = vpop.f32.mrf.mxu0
        %v1089 = vadd.f32 %v1027, %v1088
        %1090 = vmatmul.bf16.gmra.mxu0 %v1002
        %v1091 = vpop.f32.mrf.mxu0
        %v1092 = vadd.f32 %v1027, %v1091
        %v1093 = vpop.f32.mrf.mxu0
        %v1094 = vadd.f32 %v1027, %v1093
        %1095 = vmatmul.bf16.gmra.mxu0 %v1003
        %v1096 = vpop.f32.mrf.mxu0
        %v1097 = vadd.f32 %v1027, %v1096
        %v1098 = vpop.f32.mrf.mxu0
        %v1099 = vadd.f32 %v1027, %v1098
        %1100 = vmatmul.bf16.gmra.mxu0 %v1004
        %v1101 = vpop.f32.mrf.mxu0
        %v1102 = vadd.f32 %v1027, %v1101
        %v1103 = vpop.f32.mrf.mxu0
        %v1104 = vadd.f32 %v1027, %v1103
        %1105 = vmatmul.bf16.gmra.mxu0 %v1005
        %v1106 = vpop.f32.mrf.mxu0
        %v1107 = vadd.f32 %v1027, %v1106
        %v1108 = vpop.f32.mrf.mxu0
        %v1109 = vadd.f32 %v1027, %v1108
        %1110 = vmatmul.bf16.gmra.mxu0 %v1006
        %v1111 = vpop.f32.mrf.mxu0
        %v1112 = vadd.f32 %v1027, %v1111
        %v1113 = vpop.f32.mrf.mxu0
        %v1114 = vadd.f32 %v1027, %v1113
        %1115 = vmatmul.bf16.gmra.mxu0 %v1007
        %v1116 = vpop.f32.mrf.mxu0
        %v1117 = vadd.f32 %v1027, %v1116
        %v1118 = vpop.f32.mrf.mxu0
        %v1119 = vadd.f32 %v1027, %v1118
        %1120 = vmatmul.bf16.gmra.mxu0 %v1008
        %v1121 = vpop.f32.mrf.mxu0
        %v1122 = vadd.f32 %v1027, %v1121
        %v1123 = vpop.f32.mrf.mxu0
        %v1124 = vadd.f32 %v1027, %v1123
        %1125 = vdwg.mxu0
        %v1126 = vmax.f32 %v1087, 0.0
        %v1127 = vmax.f32 %v1089, 0.0
        %v1128 = vmax.f32 %v1092, 0.0
        %v1129 = vmax.f32 %v1094, 0.0
        %v1130 = vmax.f32 %v1097, 0.0
        %v1131 = vmax.f32 %v1099, 0.0
        %v1132 = vmax.f32 %v1102, 0.0
        %v1133 = vmax.f32 %v1104, 0.0
        %v1134 = vmax.f32 %v1107, 0.0
        %v1135 = vmax.f32 %v1109, 0.0
        %v1136 = vmax.f32 %v1112, 0.0
        %v1137 = vmax.f32 %v1114, 0.0
        %v1138 = vmax.f32 %v1117, 0.0
        %v1139 = vmax.f32 %v1119, 0.0
        %v1140 = vmax.f32 %v1122, 0.0
        %v1141 = vmax.f32 %v1124, 0.0
        %v1142 = vpack.c.bf16 %v1127, %v1126
        %v1143 = vpack.c.bf16 %v1129, %v1128
        %v1144 = vpack.c.bf16 %v1131, %v1130
        %v1145 = vpack.c.bf16 %v1133, %v1132
        %v1146 = vpack.c.bf16 %v1135, %v1134
        %v1147 = vpack.c.bf16 %v1137, %v1136
        %v1148 = vpack.c.bf16 %v1139, %v1138
        %v1149 = vpack.c.bf16 %v1141, %v1140
        %v1150 = vld [vmem:[#allocation11] sm:$0xf]
        %v1151 = vld [vmem:[#allocation11 + $0x4] sm:$0xf]
        %v1152 = vld [vmem:[#allocation11 + $0x8] sm:$0xf]
        %v1153 = vld [vmem:[#allocation11 + $0xc] sm:$0xf]
        %v1154 = vld [vmem:[#allocation11 + $0x10] sm:$0xf]
        %v1155 = vld [vmem:[#allocation11 + $0x14] sm:$0xf]
        %v1156 = vld [vmem:[#allocation11 + $0x18] sm:$0xf]
        %v1157 = vld [vmem:[#allocation11 + $0x1c] sm:$0xf]
        %v1158 = vld [vmem:[#allocation11 + $0x20] sm:$0xf]
        %v1159 = vld [vmem:[#allocation11 + $0x24] sm:$0xf]
        %v1160 = vld [vmem:[#allocation11 + $0x28] sm:$0xf]
        %v1161 = vld [vmem:[#allocation11 + $0x2c] sm:$0xf]
        %v1162 = vld [vmem:[#allocation11 + $0x30] sm:$0xf]
        %v1163 = vld [vmem:[#allocation11 + $0x34] sm:$0xf]
        %v1164 = vld [vmem:[#allocation11 + $0x38] sm:$0xf]
        %v1165 = vld [vmem:[#allocation11 + $0x3c] sm:$0xf]
        %v1166 = vld [vmem:[%s10] sm:$0x1]
        %v1168 = vperm.slane %v1166, 0
        %v1186 = vunpack.c.l.b16 %v1150
        %v1187 = vunpack.c.l.b16 %v1151
        %v1188 = vunpack.c.l.b16 %v1152
        %v1189 = vunpack.c.l.b16 %v1153
        %v1190 = vunpack.c.l.b16 %v1154
        %v1191 = vunpack.c.l.b16 %v1155
        %v1192 = vunpack.c.l.b16 %v1156
        %v1193 = vunpack.c.l.b16 %v1157
        %v1194 = vunpack.c.l.b16 %v1158
        %v1195 = vunpack.c.l.b16 %v1159
        %v1196 = vunpack.c.l.b16 %v1160
        %v1197 = vunpack.c.l.b16 %v1161
        %v1198 = vunpack.c.l.b16 %v1162
        %v1199 = vunpack.c.l.b16 %v1163
        %v1200 = vunpack.c.l.b16 %v1164
        %v1201 = vunpack.c.l.b16 %v1165
        %v1202 = vpack.c.b16 %v1187, %v1186
        %v1203 = vpack.c.b16 %v1189, %v1188
        %v1204 = vpack.c.b16 %v1191, %v1190
        %v1205 = vpack.c.b16 %v1193, %v1192
        %v1206 = vpack.c.b16 %v1195, %v1194
        %v1207 = vpack.c.b16 %v1197, %v1196
        %v1208 = vpack.c.b16 %v1199, %v1198
        %v1209 = vpack.c.b16 %v1201, %v1200
        %1218 = vmatpush.bf16.msra.mxu0 %v1209
        %1219 = vmatpush.bf16.msra.mxu0 %v1208
        %1220 = vmatpush.bf16.msra.mxu0 %v1207
        %1221 = vmatpush.bf16.msra.mxu0 %v1206
        %1222 = vmatpush.bf16.msra.mxu0 %v1205
        %1223 = vmatpush.bf16.msra.mxu0 %v1204
        %1224 = vmatpush.bf16.msra.mxu0 %v1203
        %1225 = vmatpush.bf16.msra.mxu0 %v1202
        %1226 = vmatmul.bf16.gmra.mxu0 %v1142
        %v1227 = vpop.f32.mrf.mxu0
        %v1228 = vadd.f32 %v1168, %v1227
        %v1229 = vpop.f32.mrf.mxu0
        %v1230 = vadd.f32 %v1168, %v1229
        %1231 = vmatmul.bf16.gmra.mxu0 %v1143
        %v1232 = vpop.f32.mrf.mxu0
        %v1233 = vadd.f32 %v1168, %v1232
        %v1234 = vpop.f32.mrf.mxu0
        %v1235 = vadd.f32 %v1168, %v1234
        %1236 = vmatmul.bf16.gmra.mxu0 %v1144
        %v1237 = vpop.f32.mrf.mxu0
        %v1238 = vadd.f32 %v1168, %v1237
        %v1239 = vpop.f32.mrf.mxu0
        %v1240 = vadd.f32 %v1168, %v1239
        %1241 = vmatmul.bf16.gmra.mxu0 %v1145
        %v1242 = vpop.f32.mrf.mxu0
        %v1243 = vadd.f32 %v1168, %v1242
        %v1244 = vpop.f32.mrf.mxu0
        %v1245 = vadd.f32 %v1168, %v1244
        %1246 = vmatmul.bf16.gmra.mxu0 %v1146
        %v1247 = vpop.f32.mrf.mxu0
        %v1248 = vadd.f32 %v1168, %v1247
        %v1249 = vpop.f32.mrf.mxu0
        %v1250 = vadd.f32 %v1168, %v1249
        %1251 = vmatmul.bf16.gmra.mxu0 %v1147
        %v1252 = vpop.f32.mrf.mxu0
        %v1253 = vadd.f32 %v1168, %v1252
        %v1254 = vpop.f32.mrf.mxu0
        %v1255 = vadd.f32 %v1168, %v1254
        %1256 = vmatmul.bf16.gmra.mxu0 %v1148
        %v1257 = vpop.f32.mrf.mxu0
        %v1258 = vadd.f32 %v1168, %v1257
        %v1259 = vpop.f32.mrf.mxu0
        %v1260 = vadd.f32 %v1168, %v1259
        %1261 = vmatmul.bf16.gmra.mxu0 %v1149
        %v1262 = vpop.f32.mrf.mxu0
        %v1263 = vadd.f32 %v1168, %v1262
        %v1264 = vpop.f32.mrf.mxu0
        %v1265 = vadd.f32 %v1168, %v1264
        %1266 = vdwg.mxu0
        %v1267 = vpack.c.bf16 %v1230, %v1228
        %v1268 = vpack.c.bf16 %v1235, %v1233
        %v1269 = vpack.c.bf16 %v1240, %v1238
        %v1270 = vpack.c.bf16 %v1245, %v1243
        %v1271 = vpack.c.bf16 %v1250, %v1248
        %v1272 = vpack.c.bf16 %v1255, %v1253
        %v1273 = vpack.c.bf16 %v1260, %v1258
        %v1274 = vpack.c.bf16 %v1265, %v1263
        %v1275 = vld [vmem:[#allocation13] sm:$0xf]
        %v1276 = vld [vmem:[#allocation13 + $0x4] sm:$0xf]
        %v1277 = vld [vmem:[#allocation13 + $0x8] sm:$0xf]
        %v1278 = vld [vmem:[#allocation13 + $0xc] sm:$0xf]
        %v1279 = vld [vmem:[#allocation13 + $0x10] sm:$0xf]
        %v1280 = vld [vmem:[#allocation13 + $0x14] sm:$0xf]
        %v1281 = vld [vmem:[#allocation13 + $0x18] sm:$0xf]
        %v1282 = vld [vmem:[#allocation13 + $0x1c] sm:$0xf]
        %v1283 = vld [vmem:[#allocation13 + $0x20] sm:$0xf]
        %v1284 = vld [vmem:[#allocation13 + $0x24] sm:$0xf]
        %v1285 = vld [vmem:[#allocation13 + $0x28] sm:$0xf]
        %v1286 = vld [vmem:[#allocation13 + $0x2c] sm:$0xf]
        %v1287 = vld [vmem:[#allocation13 + $0x30] sm:$0xf]
        %v1288 = vld [vmem:[#allocation13 + $0x34] sm:$0xf]
        %v1289 = vld [vmem:[#allocation13 + $0x38] sm:$0xf]
        %v1290 = vld [vmem:[#allocation13 + $0x3c] sm:$0xf]
        %v1291 = vld [vmem:[%s12] sm:$0x1]
        %v1293 = vperm.slane %v1291, 0
        %v1311 = vunpack.c.l.b16 %v1275
        %v1312 = vunpack.c.l.b16 %v1276
        %v1313 = vunpack.c.l.b16 %v1277
        %v1314 = vunpack.c.l.b16 %v1278
        %v1315 = vunpack.c.l.b16 %v1279
        %v1316 = vunpack.c.l.b16 %v1280
        %v1317 = vunpack.c.l.b16 %v1281
        %v1318 = vunpack.c.l.b16 %v1282
        %v1319 = vunpack.c.l.b16 %v1283
        %v1320 = vunpack.c.l.b16 %v1284
        %v1321 = vunpack.c.l.b16 %v1285
        %v1322 = vunpack.c.l.b16 %v1286
        %v1323 = vunpack.c.l.b16 %v1287
        %v1324 = vunpack.c.l.b16 %v1288
        %v1325 = vunpack.c.l.b16 %v1289
        %v1326 = vunpack.c.l.b16 %v1290
        %v1327 = vpack.c.b16 %v1312, %v1311
        %v1328 = vpack.c.b16 %v1314, %v1313
        %v1329 = vpack.c.b16 %v1316, %v1315
        %v1330 = vpack.c.b16 %v1318, %v1317
        %v1331 = vpack.c.b16 %v1320, %v1319
        %v1332 = vpack.c.b16 %v1322, %v1321
        %v1333 = vpack.c.b16 %v1324, %v1323
        %v1334 = vpack.c.b16 %v1326, %v1325
        %1343 = vmatpush.bf16.msra.mxu0 %v1334
        %1344 = vmatpush.bf16.msra.mxu0 %v1333
        %1345 = vmatpush.bf16.msra.mxu0 %v1332
        %1346 = vmatpush.bf16.msra.mxu0 %v1331
        %1347 = vmatpush.bf16.msra.mxu0 %v1330
        %1348 = vmatpush.bf16.msra.mxu0 %v1329
        %1349 = vmatpush.bf16.msra.mxu0 %v1328
        %1350 = vmatpush.bf16.msra.mxu0 %v1327
        %1351 = vmatmul.bf16.gmra.mxu0 %v1267
        %v1352 = vpop.f32.mrf.mxu0
        %v1353 = vadd.f32 %v1293, %v1352
        %v1354 = vpop.f32.mrf.mxu0
        %v1355 = vadd.f32 %v1293, %v1354
        %1356 = vmatmul.bf16.gmra.mxu0 %v1268
        %v1357 = vpop.f32.mrf.mxu0
        %v1358 = vadd.f32 %v1293, %v1357
        %v1359 = vpop.f32.mrf.mxu0
        %v1360 = vadd.f32 %v1293, %v1359
        %1361 = vmatmul.bf16.gmra.mxu0 %v1269
        %v1362 = vpop.f32.mrf.mxu0
        %v1363 = vadd.f32 %v1293, %v1362
        %v1364 = vpop.f32.mrf.mxu0
        %v1365 = vadd.f32 %v1293, %v1364
        %1366 = vmatmul.bf16.gmra.mxu0 %v1270
        %v1367 = vpop.f32.mrf.mxu0
        %v1368 = vadd.f32 %v1293, %v1367
        %v1369 = vpop.f32.mrf.mxu0
        %v1370 = vadd.f32 %v1293, %v1369
        %1371 = vmatmul.bf16.gmra.mxu0 %v1271
        %v1372 = vpop.f32.mrf.mxu0
        %v1373 = vadd.f32 %v1293, %v1372
        %v1374 = vpop.f32.mrf.mxu0
        %v1375 = vadd.f32 %v1293, %v1374
        %1376 = vmatmul.bf16.gmra.mxu0 %v1272
        %v1377 = vpop.f32.mrf.mxu0
        %v1378 = vadd.f32 %v1293, %v1377
        %v1379 = vpop.f32.mrf.mxu0
        %v1380 = vadd.f32 %v1293, %v1379
        %1381 = vmatmul.bf16.gmra.mxu0 %v1273
        %v1382 = vpop.f32.mrf.mxu0
        %v1383 = vadd.f32 %v1293, %v1382
        %v1384 = vpop.f32.mrf.mxu0
        %v1385 = vadd.f32 %v1293, %v1384
        %1386 = vmatmul.bf16.gmra.mxu0 %v1274
        %v1387 = vpop.f32.mrf.mxu0
        %v1388 = vadd.f32 %v1293, %v1387
        %v1389 = vpop.f32.mrf.mxu0
        %v1390 = vadd.f32 %v1293, %v1389
        %1391 = vdwg.mxu0
        %1392 = vst [vmem:[%s559] sm:$0xff] %v1353
        %1393 = vst [vmem:[%s559 + $0x8] sm:$0xff] %v1355
        %1394 = vst [vmem:[%s559 + $0x10] sm:$0xff] %v1358
        %1395 = vst [vmem:[%s559 + $0x18] sm:$0xff] %v1360
        %1396 = vst [vmem:[%s559 + $0x20] sm:$0xff] %v1363
        %1397 = vst [vmem:[%s559 + $0x28] sm:$0xff] %v1365
        %1398 = vst [vmem:[%s559 + $0x30] sm:$0xff] %v1368
        %1399 = vst [vmem:[%s559 + $0x38] sm:$0xff] %v1370
        %1400 = vst [vmem:[%s559 + $0x40] sm:$0xff] %v1373
        %1401 = vst [vmem:[%s559 + $0x48] sm:$0xff] %v1375
        %1402 = vst [vmem:[%s559 + $0x50] sm:$0xff] %v1378
        %1403 = vst [vmem:[%s559 + $0x58] sm:$0xff] %v1380
        %1404 = vst [vmem:[%s559 + $0x60] sm:$0xff] %v1383
        %1405 = vst [vmem:[%s559 + $0x68] sm:$0xff] %v1385
        %1406 = vst [vmem:[%s559 + $0x70] sm:$0xff] %v1388
        %1407 = vst [vmem:[%s559 + $0x78] sm:$0xff] %v1390
        %s1408 = sand.u32 %s319, 1
        %s1409 = scalar_lea.sflag [#allocation4], %s1408
        %s1410 = sand.u32 %s319, 1
        %s1411 = smul.addr %s1410, 128
        %s1412 = scalar_lea.vmem [#allocation14], %s1411
        // Predicated region
        $region101: #{tpu_custom_call.1} parent=71 // pred_check
          %p1413 = pneg %p329
        $region102: #{tpu_custom_call.1} parent=71 // pred_check_branch
          %1415 = sbr.rel (%p1413) target = $region104
        $region103: #{tpu_custom_call.1} parent=71 // pred_region
          %s1416 = smul.u32 16, %s33
          %1418 = vsyncadd %s1409, 0
          %s1419 = smul.addr %s1416, 8
          %s1420 = scalar_lea.hbm %s13, %s1419
          %s1421 = sshll.u32 %s1412, 4
          %s1422 = int_to_ptr.vmem [resolvable:$true] %s1421
          %s1423 = sshll.u32 %s1420, 4
          %s1424 = int_to_ptr.hbm [resolvable:$true] %s1423
          %1429 = dma.vmem_to_hbm [thread:$0]  %s1422, 2048, %s1424, %s1409, 128, 128, 8
        $region104: #{tpu_custom_call.1} parent=71 // pred_fallthru
          _
      $region72: #{tpu_custom_call.1} parent=5 // pred_fallthru
        _
      %p1430 = scmp.le.s32.totalorder 2, %s28
      // Predicated region
      $region105: #{tpu_custom_call.1} parent=5 // pred_check
        %p1431 = pneg %p1430
      $region106: #{tpu_custom_call.1} parent=5 // pred_check_branch
        %1433 = sbr.rel (%p1431) target = $region108
      $region107: #{tpu_custom_call.1} parent=5 // pred_region
        %s1434 = ssub.s32 %s28, 2
        // Predicated region
        $region109: #{tpu_custom_call.1} parent=107 // pred_check
          %p1435 = pneg %p335
        $region110: #{tpu_custom_call.1} parent=107 // pred_check_branch
          %1437 = sbr.rel (%p1435) target = $region112
        $region111: #{tpu_custom_call.1} parent=107 // pred_region
          %s1438 = sand.u32 %s320, 1
          %s1439 = scalar_lea.sflag [#allocation4], %s1438
          %s1440 = sand.u32 %s320, 1
          %s1441 = smul.addr %s1440, 128
          %s1442 = scalar_lea.vmem [#allocation14], %s1441
          %1444 = dma.done %s1439, 2048
        $region112: #{tpu_custom_call.1} parent=107 // pred_fallthru
          _
      $region108: #{tpu_custom_call.1} parent=5 // pred_fallthru
        _
    $region6: #{tpu_custom_call.1} parent=1 // loop_footer
      %s32 = sadd.s32 1, %s28
    $region7: #{tpu_custom_call.1} parent=1 // loop_footer_branch
      %27 = sbr.rel target = $region3
    $region8: #{tpu_custom_call.1} parent=1 // loop_exit
      _
    %1445 = vsyncpa [#allocation3], 1
    %s1446 = scalar_lea.sflag [#allocation3], 1
    %1447 = vsyncpa %s1446, 1
    %1448 = vsyncpa [#allocation6], 1
    %1449 = vsyncpa [#allocation9], 1
    %1450 = vsyncpa [#allocation12], 1
    %1451 = vsyncpa [#allocation4], 1
    %s1452 = scalar_lea.sflag [#allocation4], 1
    %1453 = vsyncpa %s1452, 1

</llo_original>
